<compile_context>
chip_gen: v7x
topology: tpu7x:2x2x1
jax: 0.10.0
libtpu: 0.0.40
codegen_flags: <defaults>
</compile_context>

<pallas_src>
import functools

import jax
import jax.numpy as jnp
from jax.experimental import pallas as pl
from jax.experimental.pallas import tpu as pltpu

EPS = 1e-5  # PyTorch BatchNorm2d default eps


@functools.lru_cache(maxsize=None)
def _vmem_limit():
    """~75% of the attached TPU generation's physical VMEM (fallback 48 MiB)."""
    try:
        cap = getattr(pltpu.get_tpu_info(), "vmem_capacity_bytes", None)
    except Exception:
        cap = None
    if not cap:
        return 48 * 1024 * 1024
    return int(cap) * 3 // 4


def _conv_row_tile(H, WCi, WCo):
    """Multiple-of-8 divisor of H giving >=2 row tiles/image within VMEM budget."""
    budget = _vmem_limit() // 4
    for th in (256, 128, 64, 32, 16, 8):
        if H % th != 0 or H // th < 2:
            continue
        step_bytes = (th + 2) * WCi * 4 + 2 * th * WCo * 4 + 4 * WCo * 4
        if step_bytes <= budget:
            return th
    return 8


def _epilogue_row_tile(R):
    for min_steps in (4, 2, 1):
        for cand in (1024, 512, 256, 128, 64, 32, 16, 8):
            if R % cand == 0 and R // cand >= min_steps:
                return cand
    return R


# --------------------------------------------------------------------------
# Banded weights: fold the 3x3 conv into 3 lane-dense MXU operands
# --------------------------------------------------------------------------
def _banded_weights(w_hwio, W):
    """band[kh][j*Ci+ci, w*Co+co] = w[kh, j-w+1, ci, co] for valid taps.

    Out-of-range taps are zero, which implements the width-direction "same"
    zero padding.  One dot of a (rows, W*Ci) activation slab against band[kh]
    performs the kw shifts, zero padding and channel contraction in a single
    lane-dense MXU pass (no im2col / concatenate / per-tap slicing in-kernel).
    """
    _, _, Ci, Co = w_hwio.shape
    jj = jnp.arange(W)[:, None]          # input column
    ww = jnp.arange(W)[None, :]          # output column
    kw = jj - ww + 1
    valid = ((kw >= 0) & (kw <= 2)).astype(jnp.float32)
    kw_safe = jnp.clip(kw, 0, 2)
    bands = []
    for kh in range(3):
        blocks = w_hwio[kh].astype(jnp.float32)[kw_safe]         # (W, W, Ci, Co)
        blocks = blocks * valid[:, :, None, None]
        bands.append(blocks.transpose(0, 2, 1, 3).reshape(W * Ci, W * Co))
    return jnp.stack(bands, axis=0)                              # (3, W*Ci, W*Co)


# --------------------------------------------------------------------------
# Kernel 1/2: (optional BN+ReLU prologue) -> 3x3 same-conv -> per-tile stats
# --------------------------------------------------------------------------
def _conv_stage_kernel(x_hbm, scale_ref, shift_ref, band_ref,
                       z_ref, stats_ref, xbuf, sem,
                       *, TH, HT, H, NH, apply_prologue):
    n = pl.program_id(0)    # image index
    rt = pl.program_id(1)   # row-tile index within the image
    WCi = xbuf.shape[1]
    WCo = z_ref.shape[-1]

    # First interior row of this tile in the flat (N*H, W*Ci) layout.
    row0 = pl.multiple_of(n * H + rt * TH, TH)
    # Halo source rows, clamped so the DMA never reads out of bounds.  Clamped
    # / cross-image halo rows are overwritten with zeros below (that IS the
    # "same"-conv zero padding in the H direction).
    top = jnp.maximum(row0 - 1, 0)
    bot = jnp.minimum(row0 + TH, NH - 1)

    # Halo-aware DMA straight from HBM into the padded row buffer — no
    # BlockSpec x-block and no VMEM->VMEM pad copy.
    cp_mid = pltpu.make_async_copy(x_hbm.at[pl.ds(row0, TH), :],
                                   xbuf.at[1:TH + 1, :], sem.at[0])
    cp_top = pltpu.make_async_copy(x_hbm.at[pl.ds(top, 1), :],
                                   xbuf.at[0:1, :], sem.at[1])
    cp_bot = pltpu.make_async_copy(x_hbm.at[pl.ds(bot, 1), :],
                                   xbuf.at[TH + 1:TH + 2, :], sem.at[2])
    cp_mid.start()
    cp_top.start()
    cp_bot.start()
    cp_mid.wait()
    cp_top.wait()
    cp_bot.wait()

    # Fused BatchNorm(prev layer, batch stats) + ReLU prologue, in place on
    # the (TH+2)-row working set (halo rows feed neighbouring taps).
    if apply_prologue:
        xbuf[...] = jnp.maximum(xbuf[...] * scale_ref[...] + shift_ref[...], 0.0)

    # Zero the 1-row halo at image top / bottom AFTER the prologue (the BN
    # shift must not leak into the zero padding).
    zrow = jnp.zeros((1, WCi), jnp.float32)

    @pl.when(rt == 0)
    def _():
        xbuf[0:1, :] = zrow

    @pl.when(rt == HT - 1)
    def _():
        xbuf[TH + 1:TH + 2, :] = zrow

    # 3x3 conv = three banded matmuls (one per kh tap row); result lands
    # directly in the lane-dense (TH, W*Co) output layout.
    acc = jnp.dot(xbuf[0:TH, :], band_ref[0], preferred_element_type=jnp.float32)
    acc = acc + jnp.dot(xbuf[1:TH + 1, :], band_ref[1],
                        preferred_element_type=jnp.float32)
    acc = acc + jnp.dot(xbuf[2:TH + 2, :], band_ref[2],
                        preferred_element_type=jnp.float32)

    z_ref[...] = acc
    # Per-tile first/second moments for the training-mode BatchNorm that
    # follows (reduced to per-channel stats by a tiny XLA glue step).
    stats_ref[:, 0:1, :] = jnp.sum(acc, axis=0, keepdims=True).reshape(1, 1, WCo)
    stats_ref[:, 1:2, :] = jnp.sum(acc * acc, axis=0, keepdims=True).reshape(1, 1, WCo)


def _conv_stage(x2d, bands, scale_lanes, shift_lanes, *, N, H, W, Ci, Co):
    NH, WCi = x2d.shape
    WCo = W * Co
    TH = _conv_row_tile(H, WCi, WCo)
    HT = H // TH

    apply_prologue = scale_lanes is not None
    if scale_lanes is None:
        scale_lanes = jnp.ones((WCi,), jnp.float32)
        shift_lanes = jnp.zeros((WCi,), jnp.float32)
    scale_row = scale_lanes.reshape(1, WCi).astype(jnp.float32)
    shift_row = shift_lanes.reshape(1, WCi).astype(jnp.float32)

    kernel = functools.partial(_conv_stage_kernel, TH=TH, HT=HT, H=H, NH=NH,
                               apply_prologue=apply_prologue)
    z, stats = pl.pallas_call(
        kernel,
        out_shape=(
            jax.ShapeDtypeStruct((NH, WCo), jnp.float32),          # lane-dense z
            jax.ShapeDtypeStruct((N * HT, 2, WCo), jnp.float32),   # per-tile stats
        ),
        grid_spec=pltpu.PrefetchScalarGridSpec(
            num_scalar_prefetch=0,
            grid=(N, HT),
            in_specs=[
                pl.BlockSpec(memory_space=pl.ANY),                     # x stays in HBM
                pl.BlockSpec((1, WCi), lambda n, rt: (0, 0)),          # BN scale (prev)
                pl.BlockSpec((1, WCi), lambda n, rt: (0, 0)),          # BN shift (prev)
                pl.BlockSpec((3, WCi, WCo), lambda n, rt: (0, 0, 0)),  # banded weights
            ],
            out_specs=(
                pl.BlockSpec((TH, WCo), lambda n, rt: (n * HT + rt, 0)),
                pl.BlockSpec((1, 2, WCo), lambda n, rt: (n * HT + rt, 0, 0)),
            ),
            scratch_shapes=[
                pltpu.VMEM((TH + 2, WCi), jnp.float32),   # halo-padded row buffer
                pltpu.SemaphoreType.DMA((3,)),
            ],
        ),
        compiler_params=pltpu.CompilerParams(
            dimension_semantics=("parallel", "parallel"),
            vmem_limit_bytes=_vmem_limit(),
        ),
    )(x2d, scale_row, shift_row, bands)
    return z, stats


# --------------------------------------------------------------------------
# Kernel 3: BN + ReLU epilogue on the lane-dense (N*H, W*Cout) slab
# --------------------------------------------------------------------------
def _bn_relu_kernel(z_ref, scale_ref, shift_ref, o_ref):
    o_ref[...] = jnp.maximum(z_ref[...] * scale_ref[...] + shift_ref[...], 0.0)


def _bn_relu(z2d, scale_lanes, shift_lanes):
    R, L = z2d.shape
    bh = _epilogue_row_tile(R)
    return pl.pallas_call(
        _bn_relu_kernel,
        out_shape=jax.ShapeDtypeStruct((R, L), jnp.float32),
        grid_spec=pltpu.PrefetchScalarGridSpec(
            num_scalar_prefetch=0,
            grid=(R // bh,),
            in_specs=[
                pl.BlockSpec((bh, L), lambda i: (i, 0)),
                pl.BlockSpec((1, L), lambda i: (0, 0)),
                pl.BlockSpec((1, L), lambda i: (0, 0)),
            ],
            out_specs=pl.BlockSpec((bh, L), lambda i: (i, 0)),
        ),
        compiler_params=pltpu.CompilerParams(
            dimension_semantics=("parallel",),
            vmem_limit_bytes=_vmem_limit(),
        ),
    )(z2d, scale_lanes.reshape(1, L).astype(jnp.float32),
      shift_lanes.reshape(1, L).astype(jnp.float32))


# --------------------------------------------------------------------------
# Glue: per-tile (sum, sumsq) -> per-channel training-mode BN affine
# --------------------------------------------------------------------------
def _stats_to_affine(stats, gamma, beta, count, W, C):
    # NOTE: E[z^2] - mean^2 in f32 is fine at these sizes; switch to Welford
    # partials if N*H*W grows large and tolerances tighten.
    tot = jnp.sum(stats, axis=0)              # (2, W*C)
    tot = tot.reshape(2, W, C).sum(axis=1)    # (2, C)
    mean = tot[0] / count
    var = jnp.maximum(tot[1] / count - mean * mean, 0.0)
    scale = gamma.astype(jnp.float32) * jax.lax.rsqrt(var + EPS)
    shift = beta.astype(jnp.float32) - mean * scale
    return scale, shift


# --------------------------------------------------------------------------
# Wrapper: DoubleConv forward (training-mode BatchNorm, matching PyTorch)
# --------------------------------------------------------------------------
@jax.jit
def double_conv(x_nchw, w1, b1, g1, be1, w2, b2, g2, be2):
    """x_nchw: (N, Cin, H, W) f32.  Conv weights are HWIO: (3, 3, Ci, Co)."""
    N, Cin, H, W = x_nchw.shape
    Cmid = w1.shape[-1]
    Cout = w2.shape[-1]
    if H % 8 != 0:
        raise NotImplementedError("row tiling assumes H % 8 == 0")
    # Conv biases cancel exactly under training-mode BN mean subtraction.
    del b1, b2

    # NCHW -> lane-dense (N*H, W*C) boundary glue.
    # TODO(synk): fold these two boundary transposes into the first/last
    # pallas_call to save one HBM round-trip each at production sizes.
    x2d = jnp.transpose(x_nchw, (0, 2, 3, 1)).astype(jnp.float32)
    x2d = x2d.reshape(N * H, W * Cin)
    bands1 = _banded_weights(w1, W)
    bands2 = _banded_weights(w2, W)

    # Stage 1: conv1 + per-tile stats -> global BN1 affine.
    z1, st1 = _conv_stage(x2d, bands1, None, None, N=N, H=H, W=W, Ci=Cin, Co=Cmid)
    scale1, shift1 = _stats_to_affine(st1, g1, be1, N * H * W, W, Cmid)

    # Stage 2: fused BN1+ReLU prologue -> conv2 -> per-tile stats -> BN2 affine.
    z2, st2 = _conv_stage(z1, bands2, jnp.tile(scale1, W), jnp.tile(shift1, W),
                          N=N, H=H, W=W, Ci=Cmid, Co=Cout)
    scale2, shift2 = _stats_to_affine(st2, g2, be2, N * H * W, W, Cout)

    # Stage 3: BN2 + ReLU on the lane-dense slab, then back to NCHW.
    out2d = _bn_relu(z2, jnp.tile(scale2, W), jnp.tile(shift2, W))
    out_nhwc = out2d.reshape(N, H, W, Cout)
    return jnp.transpose(out_nhwc, (0, 3, 1, 2))


# --------------------------------------------------------------------------
# Pure-JAX reference (mirrors the PyTorch forward, training-mode BN)
# --------------------------------------------------------------------------
def _reference(x_nchw, w1, b1, g1, be1, w2, b2, g2, be2):
    def conv(x, w, b):
        y = jax.lax.conv_general_dilated(
            x, w, window_strides=(1, 1), padding=((1, 1), (1, 1)),
            dimension_numbers=('NCHW', 'HWIO', 'NCHW'))
        return y + b[None, :, None, None]

    def bn_relu(x, g, be):
        mean = jnp.mean(x, axis=(0, 2, 3), keepdims=True)
        var = jnp.mean((x - mean) ** 2, axis=(0, 2, 3), keepdims=True)
        y = (x - mean) * jax.lax.rsqrt(var + EPS)
        y = y * g[None, :, None, None] + be[None, :, None, None]
        return jnp.maximum(y, 0.0)

    x = bn_relu(conv(x_nchw, w1, b1), g1, be1)
    x = bn_relu(conv(x, w2, b2), g2, be2)
    return x


if __name__ == "__main__":
    # DoubleConv(in_channels=4, out_channels=8); mid_channels defaults to out.
    N, Cin, H, W = 2, 4, 16, 16
    Cmid = Cout = 8

    key = jax.random.PRNGKey(0)
    kx, kw1, kb1, kg1, kbe1, kw2, kb2, kg2, kbe2 = jax.random.split(key, 9)

    x = jax.random.normal(kx, (N, Cin, H, W), jnp.float32)

    w1 = 0.1 * jax.random.normal(kw1, (3, 3, Cin, Cmid), jnp.float32)
    b1 = 0.1 * jax.random.normal(kb1, (Cmid,), jnp.float32)
    g1 = 1.0 + 0.1 * jax.random.normal(kg1, (Cmid,), jnp.float32)
    be1 = 0.1 * jax.random.normal(kbe1, (Cmid,), jnp.float32)

    w2 = 0.1 * jax.random.normal(kw2, (3, 3, Cmid, Cout), jnp.float32)
    b2 = 0.1 * jax.random.normal(kb2, (Cout,), jnp.float32)
    g2 = 1.0 + 0.1 * jax.random.normal(kg2, (Cout,), jnp.float32)
    be2 = 0.1 * jax.random.normal(kbe2, (Cout,), jnp.float32)

    out = double_conv(x, w1, b1, g1, be1, w2, b2, g2, be2)
    out = jax.block_until_ready(out)

    ref = _reference(x, w1, b1, g1, be1, w2, b2, g2, be2)
    assert out.shape == (N, Cout, H, W)
    assert jnp.allclose(out, ref, atol=1e-3, rtol=1e-3), "mismatch vs reference"

    print("KERNEL_OK")
</pallas_src>

<mosaic_0001>
module attributes {stable_mosaic.version = 11 : i64} {
  func.func @_conv_stage_kernel(%arg0: i32, %arg1: i32, %arg2: memref<32x64xf32, #tpu.memory_space<any>>, %arg3: memref<1x64xf32, #tpu.memory_space<vmem>>, %arg4: memref<1x64xf32, #tpu.memory_space<vmem>>, %arg5: memref<3x64x128xf32, #tpu.memory_space<vmem>>, %arg6: memref<8x128xf32, #tpu.memory_space<vmem>>, %arg7: memref<1x2x128xf32, #tpu.memory_space<vmem>>, %arg8: memref<10x64xf32, #tpu.memory_space<vmem>>, %arg9: memref<3x!tpu.dma_semaphore, #tpu.memory_space<semaphore_mem>>) attributes {dimension_semantics = [#tpu.dimension_semantics<parallel>, #tpu.dimension_semantics<parallel>], iteration_bounds = array<i64: 2, 2>, scalar_prefetch = 0 : i64, scratch_operands = 2 : i64, tpu.core_type = #tpu.core_type<tc>, window_params = [{}, {pipeline_mode = #tpu.pipeline_mode<synchronous>, transform_indices = @transform_1, window_bounds = array<i64: 1, 64>}, {pipeline_mode = #tpu.pipeline_mode<synchronous>, transform_indices = @transform_2, window_bounds = array<i64: 1, 64>}, {pipeline_mode = #tpu.pipeline_mode<synchronous>, transform_indices = @transform_3, window_bounds = array<i64: 3, 64, 128>}, {transform_indices = @transform_4, window_bounds = array<i64: 8, 128>}, {transform_indices = @transform_5, window_bounds = array<i64: 1, 2, 128>}]} {
    %c16_i32 = arith.constant 16 : i32
    %0 = arith.muli %arg0, %c16_i32 : i32
    %c8_i32 = arith.constant 8 : i32
    %1 = arith.muli %arg1, %c8_i32 : i32
    %2 = arith.addi %0, %1 : i32
    %3 = tpu.assume_multiple %2, 8 : i32
    %c1_i32 = arith.constant 1 : i32
    %4 = arith.subi %3, %c1_i32 : i32
    %c0_i32 = arith.constant 0 : i32
    %5 = arith.maxsi %4, %c0_i32 : i32
    %c8_i32_0 = arith.constant 8 : i32
    %6 = arith.addi %3, %c8_i32_0 : i32
    %c31_i32 = arith.constant 31 : i32
    %7 = arith.minsi %6, %c31_i32 : i32
    %c0_i32_1 = arith.constant 0 : i32
    %c0_i32_2 = arith.constant 0 : i32
    %8 = tpu.memref_slice %arg2[%3, %c0_i32_2] : memref<32x64xf32, #tpu.memory_space<any>> -> memref<8x64xf32, #tpu.memory_space<any>>
    %c1_i32_3 = arith.constant 1 : i32
    %c0_i32_4 = arith.constant 0 : i32
    %9 = tpu.memref_slice %arg8[%c1_i32_3, %c0_i32_4] : memref<10x64xf32, #tpu.memory_space<vmem>> -> memref<8x64xf32, #tpu.memory_space<vmem>>
    %10 = tpu.memref_slice %arg9[%c0_i32_1] : memref<3x!tpu.dma_semaphore, #tpu.memory_space<semaphore_mem>> -> memref<1x!tpu.dma_semaphore, #tpu.memory_space<semaphore_mem>>
    %11 = tpu.memref_squeeze %10 : memref<1x!tpu.dma_semaphore, #tpu.memory_space<semaphore_mem>> -> memref<!tpu.dma_semaphore, #tpu.memory_space<semaphore_mem>>
    tpu.enqueue_dma source(%8 : memref<8x64xf32, #tpu.memory_space<any>>) target(%9 : memref<8x64xf32, #tpu.memory_space<vmem>>) target_semaphore(%11 : memref<!tpu.dma_semaphore, #tpu.memory_space<semaphore_mem>>)
    %c1_i32_5 = arith.constant 1 : i32
    %c0_i32_6 = arith.constant 0 : i32
    %12 = tpu.memref_slice %arg2[%5, %c0_i32_6] : memref<32x64xf32, #tpu.memory_space<any>> -> memref<1x64xf32, #tpu.memory_space<any>>
    %c0_i32_7 = arith.constant 0 : i32
    %c0_i32_8 = arith.constant 0 : i32
    %13 = tpu.memref_slice %arg8[%c0_i32_7, %c0_i32_8] : memref<10x64xf32, #tpu.memory_space<vmem>> -> memref<1x64xf32, #tpu.memory_space<vmem>>
    %14 = tpu.memref_slice %arg9[%c1_i32_5] : memref<3x!tpu.dma_semaphore, #tpu.memory_space<semaphore_mem>> -> memref<1x!tpu.dma_semaphore, #tpu.memory_space<semaphore_mem>>
    %15 = tpu.memref_squeeze %14 : memref<1x!tpu.dma_semaphore, #tpu.memory_space<semaphore_mem>> -> memref<!tpu.dma_semaphore, #tpu.memory_space<semaphore_mem>>
    tpu.enqueue_dma source(%12 : memref<1x64xf32, #tpu.memory_space<any>>) target(%13 : memref<1x64xf32, #tpu.memory_space<vmem>>) target_semaphore(%15 : memref<!tpu.dma_semaphore, #tpu.memory_space<semaphore_mem>>)
    %c2_i32 = arith.constant 2 : i32
    %c0_i32_9 = arith.constant 0 : i32
    %16 = tpu.memref_slice %arg2[%7, %c0_i32_9] : memref<32x64xf32, #tpu.memory_space<any>> -> memref<1x64xf32, #tpu.memory_space<any>>
    %c9_i32 = arith.constant 9 : i32
    %c0_i32_10 = arith.constant 0 : i32
    %17 = tpu.memref_slice %arg8[%c9_i32, %c0_i32_10] : memref<10x64xf32, #tpu.memory_space<vmem>> -> memref<1x64xf32, #tpu.memory_space<vmem>>
    %18 = tpu.memref_slice %arg9[%c2_i32] : memref<3x!tpu.dma_semaphore, #tpu.memory_space<semaphore_mem>> -> memref<1x!tpu.dma_semaphore, #tpu.memory_space<semaphore_mem>>
    %19 = tpu.memref_squeeze %18 : memref<1x!tpu.dma_semaphore, #tpu.memory_space<semaphore_mem>> -> memref<!tpu.dma_semaphore, #tpu.memory_space<semaphore_mem>>
    tpu.enqueue_dma source(%16 : memref<1x64xf32, #tpu.memory_space<any>>) target(%17 : memref<1x64xf32, #tpu.memory_space<vmem>>) target_semaphore(%19 : memref<!tpu.dma_semaphore, #tpu.memory_space<semaphore_mem>>)
    %c0_i32_11 = arith.constant 0 : i32
    %c0_i32_12 = arith.constant 0 : i32
    %20 = tpu.memref_slice %arg2[%3, %c0_i32_12] : memref<32x64xf32, #tpu.memory_space<any>> -> memref<8x64xf32, #tpu.memory_space<any>>
    %c1_i32_13 = arith.constant 1 : i32
    %c0_i32_14 = arith.constant 0 : i32
    %21 = tpu.memref_slice %arg8[%c1_i32_13, %c0_i32_14] : memref<10x64xf32, #tpu.memory_space<vmem>> -> memref<8x64xf32, #tpu.memory_space<vmem>>
    %22 = tpu.memref_slice %arg9[%c0_i32_11] : memref<3x!tpu.dma_semaphore, #tpu.memory_space<semaphore_mem>> -> memref<1x!tpu.dma_semaphore, #tpu.memory_space<semaphore_mem>>
    %23 = tpu.memref_squeeze %22 : memref<1x!tpu.dma_semaphore, #tpu.memory_space<semaphore_mem>> -> memref<!tpu.dma_semaphore, #tpu.memory_space<semaphore_mem>>
    tpu.wait_dma2 semaphore(%23 : memref<!tpu.dma_semaphore, #tpu.memory_space<semaphore_mem>>) src(%20 : memref<8x64xf32, #tpu.memory_space<any>>) dst(%21 : memref<8x64xf32, #tpu.memory_space<vmem>>)
    %c1_i32_15 = arith.constant 1 : i32
    %c0_i32_16 = arith.constant 0 : i32
    %24 = tpu.memref_slice %arg2[%5, %c0_i32_16] : memref<32x64xf32, #tpu.memory_space<any>> -> memref<1x64xf32, #tpu.memory_space<any>>
    %c0_i32_17 = arith.constant 0 : i32
    %c0_i32_18 = arith.constant 0 : i32
    %25 = tpu.memref_slice %arg8[%c0_i32_17, %c0_i32_18] : memref<10x64xf32, #tpu.memory_space<vmem>> -> memref<1x64xf32, #tpu.memory_space<vmem>>
    %26 = tpu.memref_slice %arg9[%c1_i32_15] : memref<3x!tpu.dma_semaphore, #tpu.memory_space<semaphore_mem>> -> memref<1x!tpu.dma_semaphore, #tpu.memory_space<semaphore_mem>>
    %27 = tpu.memref_squeeze %26 : memref<1x!tpu.dma_semaphore, #tpu.memory_space<semaphore_mem>> -> memref<!tpu.dma_semaphore, #tpu.memory_space<semaphore_mem>>
    tpu.wait_dma2 semaphore(%27 : memref<!tpu.dma_semaphore, #tpu.memory_space<semaphore_mem>>) src(%24 : memref<1x64xf32, #tpu.memory_space<any>>) dst(%25 : memref<1x64xf32, #tpu.memory_space<vmem>>)
    %c2_i32_19 = arith.constant 2 : i32
    %c0_i32_20 = arith.constant 0 : i32
    %28 = tpu.memref_slice %arg2[%7, %c0_i32_20] : memref<32x64xf32, #tpu.memory_space<any>> -> memref<1x64xf32, #tpu.memory_space<any>>
    %c9_i32_21 = arith.constant 9 : i32
    %c0_i32_22 = arith.constant 0 : i32
    %29 = tpu.memref_slice %arg8[%c9_i32_21, %c0_i32_22] : memref<10x64xf32, #tpu.memory_space<vmem>> -> memref<1x64xf32, #tpu.memory_space<vmem>>
    %30 = tpu.memref_slice %arg9[%c2_i32_19] : memref<3x!tpu.dma_semaphore, #tpu.memory_space<semaphore_mem>> -> memref<1x!tpu.dma_semaphore, #tpu.memory_space<semaphore_mem>>
    %31 = tpu.memref_squeeze %30 : memref<1x!tpu.dma_semaphore, #tpu.memory_space<semaphore_mem>> -> memref<!tpu.dma_semaphore, #tpu.memory_space<semaphore_mem>>
    tpu.wait_dma2 semaphore(%31 : memref<!tpu.dma_semaphore, #tpu.memory_space<semaphore_mem>>) src(%28 : memref<1x64xf32, #tpu.memory_space<any>>) dst(%29 : memref<1x64xf32, #tpu.memory_space<vmem>>)
    %cst = arith.constant 0.000000e+00 : f32
    %32 = vector.broadcast %cst : f32 to vector<1x64xf32>
    %c0_i32_23 = arith.constant 0 : i32
    %33 = arith.cmpi eq, %arg1, %c0_i32_23 : i32
    %34 = arith.extui %33 : i1 to i32
    %c0_i32_24 = arith.constant 0 : i32
    %35 = arith.cmpi ne, %34, %c0_i32_24 : i32
    scf.if %35 {
      %c0_52 = arith.constant 0 : index
      %c0_53 = arith.constant 0 : index
      %63 = vector.load %arg8[%c0_52, %c0_53] : memref<10x64xf32, #tpu.memory_space<vmem>>, vector<1x64xf32>
      tpu.vector_store %arg8[%c0_52, %c0_53], %32 {strides = array<i32>} : memref<10x64xf32, #tpu.memory_space<vmem>>, vector<1x64xf32>,
    } else {
    }
    %c1_i32_25 = arith.constant 1 : i32
    %36 = arith.cmpi eq, %arg1, %c1_i32_25 : i32
    %37 = arith.extui %36 : i1 to i32
    %c0_i32_26 = arith.constant 0 : i32
    %38 = arith.cmpi ne, %37, %c0_i32_26 : i32
    scf.if %38 {
      %c9 = arith.constant 9 : index
      %c0_52 = arith.constant 0 : index
      %63 = vector.load %arg8[%c9, %c0_52] : memref<10x64xf32, #tpu.memory_space<vmem>>, vector<1x64xf32>
      tpu.vector_store %arg8[%c9, %c0_52], %32 {strides = array<i32>} : memref<10x64xf32, #tpu.memory_space<vmem>>, vector<1x64xf32>,
    } else {
    }
    %c0 = arith.constant 0 : index
    %c0_27 = arith.constant 0 : index
    %39 = vector.load %arg8[%c0, %c0_27] : memref<10x64xf32, #tpu.memory_space<vmem>>, vector<8x64xf32>
    %c0_28 = arith.constant 0 : index
    %c0_29 = arith.constant 0 : index
    %c0_30 = arith.constant 0 : index
    %40 = vector.load %arg5[%c0_28, %c0_29, %c0_30] : memref<3x64x128xf32, #tpu.memory_space<vmem>>, vector<1x64x128xf32>
    %41 = vector.shape_cast %40 : vector<1x64x128xf32> to vector<64x128xf32>
    %cst_31 = arith.constant dense<0.000000e+00> : vector<8x128xf32>
    %42 = tpu.matmul %39, %41, %cst_31 {dimension_numbers = #tpu.dot_dimension_numbers<[1], [0], [0], [1], [0, 0, 1, 1], [], []>} : vector<8x64xf32>, vector<64x128xf32>, vector<8x128xf32> -> vector<8x128xf32>
    %c1 = arith.constant 1 : index
    %c0_32 = arith.constant 0 : index
    %43 = vector.load %arg8[%c1, %c0_32] : memref<10x64xf32, #tpu.memory_space<vmem>>, vector<8x64xf32>
    %c1_33 = arith.constant 1 : index
    %c0_34 = arith.constant 0 : index
    %c0_35 = arith.constant 0 : index
    %44 = vector.load %arg5[%c1_33, %c0_34, %c0_35] : memref<3x64x128xf32, #tpu.memory_space<vmem>>, vector<1x64x128xf32>
    %45 = vector.shape_cast %44 : vector<1x64x128xf32> to vector<64x128xf32>
    %cst_36 = arith.constant dense<0.000000e+00> : vector<8x128xf32>
    %46 = tpu.matmul %43, %45, %cst_36 {dimension_numbers = #tpu.dot_dimension_numbers<[1], [0], [0], [1], [0, 0, 1, 1], [], []>} : vector<8x64xf32>, vector<64x128xf32>, vector<8x128xf32> -> vector<8x128xf32>
    %47 = arith.addf %42, %46 : vector<8x128xf32>
    %c2 = arith.constant 2 : index
    %c0_37 = arith.constant 0 : index
    %48 = vector.load %arg8[%c2, %c0_37] : memref<10x64xf32, #tpu.memory_space<vmem>>, vector<8x64xf32>
    %c2_38 = arith.constant 2 : index
    %c0_39 = arith.constant 0 : index
    %c0_40 = arith.constant 0 : index
    %49 = vector.load %arg5[%c2_38, %c0_39, %c0_40] : memref<3x64x128xf32, #tpu.memory_space<vmem>>, vector<1x64x128xf32>
    %50 = vector.shape_cast %49 : vector<1x64x128xf32> to vector<64x128xf32>
    %cst_41 = arith.constant dense<0.000000e+00> : vector<8x128xf32>
    %51 = tpu.matmul %48, %50, %cst_41 {dimension_numbers = #tpu.dot_dimension_numbers<[1], [0], [0], [1], [0, 0, 1, 1], [], []>} : vector<8x64xf32>, vector<64x128xf32>, vector<8x128xf32> -> vector<8x128xf32>
    %52 = arith.addf %47, %51 : vector<8x128xf32>
    %c0_42 = arith.constant 0 : index
    %c0_43 = arith.constant 0 : index
    %53 = vector.load %arg6[%c0_42, %c0_43] : memref<8x128xf32, #tpu.memory_space<vmem>>, vector<8x128xf32>
    tpu.vector_store %arg6[%c0_42, %c0_43], %52 {strides = array<i32>} : memref<8x128xf32, #tpu.memory_space<vmem>>, vector<8x128xf32>,
    %cst_44 = arith.constant dense<0.000000e+00> : vector<128xf32>
    %54 = vector.multi_reduction <add>, %52, %cst_44 [0] : vector<8x128xf32> to vector<128xf32>
    %55 = vector.shape_cast %54 : vector<128xf32> to vector<1x128xf32>
    %56 = vector.shape_cast %55 : vector<1x128xf32> to vector<1x1x128xf32>
    %c0_45 = arith.constant 0 : index
    %c0_46 = arith.constant 0 : index
    %c0_47 = arith.constant 0 : index
    %57 = vector.load %arg7[%c0_45, %c0_46, %c0_47] : memref<1x2x128xf32, #tpu.memory_space<vmem>>, vector<1x1x128xf32>
    tpu.vector_store %arg7[%c0_45, %c0_46, %c0_47], %56 {strides = array<i32>} : memref<1x2x128xf32, #tpu.memory_space<vmem>>, vector<1x1x128xf32>,
    %58 = arith.mulf %52, %52 : vector<8x128xf32>
    %cst_48 = arith.constant dense<0.000000e+00> : vector<128xf32>
    %59 = vector.multi_reduction <add>, %58, %cst_48 [0] : vector<8x128xf32> to vector<128xf32>
    %60 = vector.shape_cast %59 : vector<128xf32> to vector<1x128xf32>
    %61 = vector.shape_cast %60 : vector<1x128xf32> to vector<1x1x128xf32>
    %c0_49 = arith.constant 0 : index
    %c1_50 = arith.constant 1 : index
    %c0_51 = arith.constant 0 : index
    %62 = vector.load %arg7[%c0_49, %c1_50, %c0_51] : memref<1x2x128xf32, #tpu.memory_space<vmem>>, vector<1x1x128xf32>
    tpu.vector_store %arg7[%c0_49, %c1_50, %c0_51], %61 {strides = array<i32>} : memref<1x2x128xf32, #tpu.memory_space<vmem>>, vector<1x1x128xf32>,
    return
  }
  func.func @transform_1(%arg0: i32, %arg1: i32) -> (i32, i32) {
    %c0_i32 = arith.constant 0 : i32
    %c0_i32_0 = arith.constant 0 : i32
    %c0_i32_1 = arith.constant 0 : i32
    return %c0_i32, %c0_i32_0 : i32, i32
  }
  func.func @transform_2(%arg0: i32, %arg1: i32) -> (i32, i32) {
    %c0_i32 = arith.constant 0 : i32
    %c0_i32_0 = arith.constant 0 : i32
    %c0_i32_1 = arith.constant 0 : i32
    return %c0_i32, %c0_i32_0 : i32, i32
  }
  func.func @transform_3(%arg0: i32, %arg1: i32) -> (i32, i32, i32) {
    %c0_i32 = arith.constant 0 : i32
    %c0_i32_0 = arith.constant 0 : i32
    %c0_i32_1 = arith.constant 0 : i32
    %c0_i32_2 = arith.constant 0 : i32
    return %c0_i32, %c0_i32_0, %c0_i32_1 : i32, i32, i32
  }
  func.func @transform_4(%arg0: i32, %arg1: i32) -> (i32, i32) {
    %c2_i32 = arith.constant 2 : i32
    %0 = arith.muli %arg0, %c2_i32 : i32
    %1 = arith.addi %0, %arg1 : i32
    %c0_i32 = arith.constant 0 : i32
    %c0_i32_0 = arith.constant 0 : i32
    return %1, %c0_i32 : i32, i32
  }
  func.func @transform_5(%arg0: i32, %arg1: i32) -> (i32, i32, i32) {
    %c2_i32 = arith.constant 2 : i32
    %0 = arith.muli %arg0, %c2_i32 : i32
    %1 = arith.addi %0, %arg1 : i32
    %c0_i32 = arith.constant 0 : i32
    %c0_i32_0 = arith.constant 0 : i32
    %c0_i32_1 = arith.constant 0 : i32
    return %1, %c0_i32, %c0_i32_0 : i32, i32, i32
  }
}

module attributes {stable_mosaic.version = 11 : i64} {
  func.func @_conv_stage_kernel(%arg0: i32, %arg1: i32, %arg2: memref<32x128xf32, #tpu.memory_space<any>>, %arg3: memref<1x128xf32, #tpu.memory_space<vmem>>, %arg4: memref<1x128xf32, #tpu.memory_space<vmem>>, %arg5: memref<3x128x128xf32, #tpu.memory_space<vmem>>, %arg6: memref<8x128xf32, #tpu.memory_space<vmem>>, %arg7: memref<1x2x128xf32, #tpu.memory_space<vmem>>, %arg8: memref<10x128xf32, #tpu.memory_space<vmem>>, %arg9: memref<3x!tpu.dma_semaphore, #tpu.memory_space<semaphore_mem>>) attributes {dimension_semantics = [#tpu.dimension_semantics<parallel>, #tpu.dimension_semantics<parallel>], iteration_bounds = array<i64: 2, 2>, scalar_prefetch = 0 : i64, scratch_operands = 2 : i64, tpu.core_type = #tpu.core_type<tc>, window_params = [{}, {pipeline_mode = #tpu.pipeline_mode<synchronous>, transform_indices = @transform_1, window_bounds = array<i64: 1, 128>}, {pipeline_mode = #tpu.pipeline_mode<synchronous>, transform_indices = @transform_2, window_bounds = array<i64: 1, 128>}, {pipeline_mode = #tpu.pipeline_mode<synchronous>, transform_indices = @transform_3, window_bounds = array<i64: 3, 128, 128>}, {transform_indices = @transform_4, window_bounds = array<i64: 8, 128>}, {transform_indices = @transform_5, window_bounds = array<i64: 1, 2, 128>}]} {
    %c16_i32 = arith.constant 16 : i32
    %0 = arith.muli %arg0, %c16_i32 : i32
    %c8_i32 = arith.constant 8 : i32
    %1 = arith.muli %arg1, %c8_i32 : i32
    %2 = arith.addi %0, %1 : i32
    %3 = tpu.assume_multiple %2, 8 : i32
    %c1_i32 = arith.constant 1 : i32
    %4 = arith.subi %3, %c1_i32 : i32
    %c0_i32 = arith.constant 0 : i32
    %5 = arith.maxsi %4, %c0_i32 : i32
    %c8_i32_0 = arith.constant 8 : i32
    %6 = arith.addi %3, %c8_i32_0 : i32
    %c31_i32 = arith.constant 31 : i32
    %7 = arith.minsi %6, %c31_i32 : i32
    %c0_i32_1 = arith.constant 0 : i32
    %c0_i32_2 = arith.constant 0 : i32
    %8 = tpu.memref_slice %arg2[%3, %c0_i32_2] : memref<32x128xf32, #tpu.memory_space<any>> -> memref<8x128xf32, #tpu.memory_space<any>>
    %c1_i32_3 = arith.constant 1 : i32
    %c0_i32_4 = arith.constant 0 : i32
    %9 = tpu.memref_slice %arg8[%c1_i32_3, %c0_i32_4] : memref<10x128xf32, #tpu.memory_space<vmem>> -> memref<8x128xf32, #tpu.memory_space<vmem>>
    %10 = tpu.memref_slice %arg9[%c0_i32_1] : memref<3x!tpu.dma_semaphore, #tpu.memory_space<semaphore_mem>> -> memref<1x!tpu.dma_semaphore, #tpu.memory_space<semaphore_mem>>
    %11 = tpu.memref_squeeze %10 : memref<1x!tpu.dma_semaphore, #tpu.memory_space<semaphore_mem>> -> memref<!tpu.dma_semaphore, #tpu.memory_space<semaphore_mem>>
    tpu.enqueue_dma source(%8 : memref<8x128xf32, #tpu.memory_space<any>>) target(%9 : memref<8x128xf32, #tpu.memory_space<vmem>>) target_semaphore(%11 : memref<!tpu.dma_semaphore, #tpu.memory_space<semaphore_mem>>)
    %c1_i32_5 = arith.constant 1 : i32
    %c0_i32_6 = arith.constant 0 : i32
    %12 = tpu.memref_slice %arg2[%5, %c0_i32_6] : memref<32x128xf32, #tpu.memory_space<any>> -> memref<1x128xf32, #tpu.memory_space<any>>
    %c0_i32_7 = arith.constant 0 : i32
    %c0_i32_8 = arith.constant 0 : i32
    %13 = tpu.memref_slice %arg8[%c0_i32_7, %c0_i32_8] : memref<10x128xf32, #tpu.memory_space<vmem>> -> memref<1x128xf32, #tpu.memory_space<vmem>>
    %14 = tpu.memref_slice %arg9[%c1_i32_5] : memref<3x!tpu.dma_semaphore, #tpu.memory_space<semaphore_mem>> -> memref<1x!tpu.dma_semaphore, #tpu.memory_space<semaphore_mem>>
    %15 = tpu.memref_squeeze %14 : memref<1x!tpu.dma_semaphore, #tpu.memory_space<semaphore_mem>> -> memref<!tpu.dma_semaphore, #tpu.memory_space<semaphore_mem>>
    tpu.enqueue_dma source(%12 : memref<1x128xf32, #tpu.memory_space<any>>) target(%13 : memref<1x128xf32, #tpu.memory_space<vmem>>) target_semaphore(%15 : memref<!tpu.dma_semaphore, #tpu.memory_space<semaphore_mem>>)
    %c2_i32 = arith.constant 2 : i32
    %c0_i32_9 = arith.constant 0 : i32
    %16 = tpu.memref_slice %arg2[%7, %c0_i32_9] : memref<32x128xf32, #tpu.memory_space<any>> -> memref<1x128xf32, #tpu.memory_space<any>>
    %c9_i32 = arith.constant 9 : i32
    %c0_i32_10 = arith.constant 0 : i32
    %17 = tpu.memref_slice %arg8[%c9_i32, %c0_i32_10] : memref<10x128xf32, #tpu.memory_space<vmem>> -> memref<1x128xf32, #tpu.memory_space<vmem>>
    %18 = tpu.memref_slice %arg9[%c2_i32] : memref<3x!tpu.dma_semaphore, #tpu.memory_space<semaphore_mem>> -> memref<1x!tpu.dma_semaphore, #tpu.memory_space<semaphore_mem>>
    %19 = tpu.memref_squeeze %18 : memref<1x!tpu.dma_semaphore, #tpu.memory_space<semaphore_mem>> -> memref<!tpu.dma_semaphore, #tpu.memory_space<semaphore_mem>>
    tpu.enqueue_dma source(%16 : memref<1x128xf32, #tpu.memory_space<any>>) target(%17 : memref<1x128xf32, #tpu.memory_space<vmem>>) target_semaphore(%19 : memref<!tpu.dma_semaphore, #tpu.memory_space<semaphore_mem>>)
    %c0_i32_11 = arith.constant 0 : i32
    %c0_i32_12 = arith.constant 0 : i32
    %20 = tpu.memref_slice %arg2[%3, %c0_i32_12] : memref<32x128xf32, #tpu.memory_space<any>> -> memref<8x128xf32, #tpu.memory_space<any>>
    %c1_i32_13 = arith.constant 1 : i32
    %c0_i32_14 = arith.constant 0 : i32
    %21 = tpu.memref_slice %arg8[%c1_i32_13, %c0_i32_14] : memref<10x128xf32, #tpu.memory_space<vmem>> -> memref<8x128xf32, #tpu.memory_space<vmem>>
    %22 = tpu.memref_slice %arg9[%c0_i32_11] : memref<3x!tpu.dma_semaphore, #tpu.memory_space<semaphore_mem>> -> memref<1x!tpu.dma_semaphore, #tpu.memory_space<semaphore_mem>>
    %23 = tpu.memref_squeeze %22 : memref<1x!tpu.dma_semaphore, #tpu.memory_space<semaphore_mem>> -> memref<!tpu.dma_semaphore, #tpu.memory_space<semaphore_mem>>
    tpu.wait_dma2 semaphore(%23 : memref<!tpu.dma_semaphore, #tpu.memory_space<semaphore_mem>>) src(%20 : memref<8x128xf32, #tpu.memory_space<any>>) dst(%21 : memref<8x128xf32, #tpu.memory_space<vmem>>)
    %c1_i32_15 = arith.constant 1 : i32
    %c0_i32_16 = arith.constant 0 : i32
    %24 = tpu.memref_slice %arg2[%5, %c0_i32_16] : memref<32x128xf32, #tpu.memory_space<any>> -> memref<1x128xf32, #tpu.memory_space<any>>
    %c0_i32_17 = arith.constant 0 : i32
    %c0_i32_18 = arith.constant 0 : i32
    %25 = tpu.memref_slice %arg8[%c0_i32_17, %c0_i32_18] : memref<10x128xf32, #tpu.memory_space<vmem>> -> memref<1x128xf32, #tpu.memory_space<vmem>>
    %26 = tpu.memref_slice %arg9[%c1_i32_15] : memref<3x!tpu.dma_semaphore, #tpu.memory_space<semaphore_mem>> -> memref<1x!tpu.dma_semaphore, #tpu.memory_space<semaphore_mem>>
    %27 = tpu.memref_squeeze %26 : memref<1x!tpu.dma_semaphore, #tpu.memory_space<semaphore_mem>> -> memref<!tpu.dma_semaphore, #tpu.memory_space<semaphore_mem>>
    tpu.wait_dma2 semaphore(%27 : memref<!tpu.dma_semaphore, #tpu.memory_space<semaphore_mem>>) src(%24 : memref<1x128xf32, #tpu.memory_space<any>>) dst(%25 : memref<1x128xf32, #tpu.memory_space<vmem>>)
    %c2_i32_19 = arith.constant 2 : i32
    %c0_i32_20 = arith.constant 0 : i32
    %28 = tpu.memref_slice %arg2[%7, %c0_i32_20] : memref<32x128xf32, #tpu.memory_space<any>> -> memref<1x128xf32, #tpu.memory_space<any>>
    %c9_i32_21 = arith.constant 9 : i32
    %c0_i32_22 = arith.constant 0 : i32
    %29 = tpu.memref_slice %arg8[%c9_i32_21, %c0_i32_22] : memref<10x128xf32, #tpu.memory_space<vmem>> -> memref<1x128xf32, #tpu.memory_space<vmem>>
    %30 = tpu.memref_slice %arg9[%c2_i32_19] : memref<3x!tpu.dma_semaphore, #tpu.memory_space<semaphore_mem>> -> memref<1x!tpu.dma_semaphore, #tpu.memory_space<semaphore_mem>>
    %31 = tpu.memref_squeeze %30 : memref<1x!tpu.dma_semaphore, #tpu.memory_space<semaphore_mem>> -> memref<!tpu.dma_semaphore, #tpu.memory_space<semaphore_mem>>
    tpu.wait_dma2 semaphore(%31 : memref<!tpu.dma_semaphore, #tpu.memory_space<semaphore_mem>>) src(%28 : memref<1x128xf32, #tpu.memory_space<any>>) dst(%29 : memref<1x128xf32, #tpu.memory_space<vmem>>)
    %c0 = arith.constant 0 : index
    %c0_23 = arith.constant 0 : index
    %32 = vector.load %arg8[%c0, %c0_23] : memref<10x128xf32, #tpu.memory_space<vmem>>, vector<10x128xf32>
    %c0_24 = arith.constant 0 : index
    %c0_25 = arith.constant 0 : index
    %33 = vector.load %arg3[%c0_24, %c0_25] : memref<1x128xf32, #tpu.memory_space<vmem>>, vector<1x128xf32>
    %34 = vector.broadcast %33 : vector<1x128xf32> to vector<10x128xf32>
    %35 = arith.mulf %32, %34 : vector<10x128xf32>
    %c0_26 = arith.constant 0 : index
    %c0_27 = arith.constant 0 : index
    %36 = vector.load %arg4[%c0_26, %c0_27] : memref<1x128xf32, #tpu.memory_space<vmem>>, vector<1x128xf32>
    %37 = vector.broadcast %36 : vector<1x128xf32> to vector<10x128xf32>
    %38 = arith.addf %35, %37 : vector<10x128xf32>
    %cst = arith.constant 0.000000e+00 : f32
    %39 = vector.broadcast %cst : f32 to vector<10x128xf32>
    %40 = arith.maximumf %38, %39 : vector<10x128xf32>
    %c0_28 = arith.constant 0 : index
    %c0_29 = arith.constant 0 : index
    %41 = vector.load %arg8[%c0_28, %c0_29] : memref<10x128xf32, #tpu.memory_space<vmem>>, vector<10x128xf32>
    tpu.vector_store %arg8[%c0_28, %c0_29], %40 {strides = array<i32>} : memref<10x128xf32, #tpu.memory_space<vmem>>, vector<10x128xf32>,
    %cst_30 = arith.constant 0.000000e+00 : f32
    %42 = vector.broadcast %cst_30 : f32 to vector<1x128xf32>
    %c0_i32_31 = arith.constant 0 : i32
    %43 = arith.cmpi eq, %arg1, %c0_i32_31 : i32
    %44 = arith.extui %43 : i1 to i32
    %c0_i32_32 = arith.constant 0 : i32
    %45 = arith.cmpi ne, %44, %c0_i32_32 : i32
    scf.if %45 {
      %c0_61 = arith.constant 0 : index
      %c0_62 = arith.constant 0 : index
      %73 = vector.load %arg8[%c0_61, %c0_62] : memref<10x128xf32, #tpu.memory_space<vmem>>, vector<1x128xf32>
      tpu.vector_store %arg8[%c0_61, %c0_62], %42 {strides = array<i32>} : memref<10x128xf32, #tpu.memory_space<vmem>>, vector<1x128xf32>,
    } else {
    }
    %c1_i32_33 = arith.constant 1 : i32
    %46 = arith.cmpi eq, %arg1, %c1_i32_33 : i32
    %47 = arith.extui %46 : i1 to i32
    %c0_i32_34 = arith.constant 0 : i32
    %48 = arith.cmpi ne, %47, %c0_i32_34 : i32
    scf.if %48 {
      %c9 = arith.constant 9 : index
      %c0_61 = arith.constant 0 : index
      %73 = vector.load %arg8[%c9, %c0_61] : memref<10x128xf32, #tpu.memory_space<vmem>>, vector<1x128xf32>
      tpu.vector_store %arg8[%c9, %c0_61], %42 {strides = array<i32>} : memref<10x128xf32, #tpu.memory_space<vmem>>, vector<1x128xf32>,
    } else {
    }
    %c0_35 = arith.constant 0 : index
    %c0_36 = arith.constant 0 : index
    %49 = vector.load %arg8[%c0_35, %c0_36] : memref<10x128xf32, #tpu.memory_space<vmem>>, vector<8x128xf32>
    %c0_37 = arith.constant 0 : index
    %c0_38 = arith.constant 0 : index
    %c0_39 = arith.constant 0 : index
    %50 = vector.load %arg5[%c0_37, %c0_38, %c0_39] : memref<3x128x128xf32, #tpu.memory_space<vmem>>, vector<1x128x128xf32>
    %51 = vector.shape_cast %50 : vector<1x128x128xf32> to vector<128x128xf32>
    %cst_40 = arith.constant dense<0.000000e+00> : vector<8x128xf32>
    %52 = tpu.matmul %49, %51, %cst_40 {dimension_numbers = #tpu.dot_dimension_numbers<[1], [0], [0], [1], [0, 0, 1, 1], [], []>} : vector<8x128xf32>, vector<128x128xf32>, vector<8x128xf32> -> vector<8x128xf32>
    %c1 = arith.constant 1 : index
    %c0_41 = arith.constant 0 : index
    %53 = vector.load %arg8[%c1, %c0_41] : memref<10x128xf32, #tpu.memory_space<vmem>>, vector<8x128xf32>
    %c1_42 = arith.constant 1 : index
    %c0_43 = arith.constant 0 : index
    %c0_44 = arith.constant 0 : index
    %54 = vector.load %arg5[%c1_42, %c0_43, %c0_44] : memref<3x128x128xf32, #tpu.memory_space<vmem>>, vector<1x128x128xf32>
    %55 = vector.shape_cast %54 : vector<1x128x128xf32> to vector<128x128xf32>
    %cst_45 = arith.constant dense<0.000000e+00> : vector<8x128xf32>
    %56 = tpu.matmul %53, %55, %cst_45 {dimension_numbers = #tpu.dot_dimension_numbers<[1], [0], [0], [1], [0, 0, 1, 1], [], []>} : vector<8x128xf32>, vector<128x128xf32>, vector<8x128xf32> -> vector<8x128xf32>
    %57 = arith.addf %52, %56 : vector<8x128xf32>
    %c2 = arith.constant 2 : index
    %c0_46 = arith.constant 0 : index
    %58 = vector.load %arg8[%c2, %c0_46] : memref<10x128xf32, #tpu.memory_space<vmem>>, vector<8x128xf32>
    %c2_47 = arith.constant 2 : index
    %c0_48 = arith.constant 0 : index
    %c0_49 = arith.constant 0 : index
    %59 = vector.load %arg5[%c2_47, %c0_48, %c0_49] : memref<3x128x128xf32, #tpu.memory_space<vmem>>, vector<1x128x128xf32>
    %60 = vector.shape_cast %59 : vector<1x128x128xf32> to vector<128x128xf32>
    %cst_50 = arith.constant dense<0.000000e+00> : vector<8x128xf32>
    %61 = tpu.matmul %58, %60, %cst_50 {dimension_numbers = #tpu.dot_dimension_numbers<[1], [0], [0], [1], [0, 0, 1, 1], [], []>} : vector<8x128xf32>, vector<128x128xf32>, vector<8x128xf32> -> vector<8x128xf32>
    %62 = arith.addf %57, %61 : vector<8x128xf32>
    %c0_51 = arith.constant 0 : index
    %c0_52 = arith.constant 0 : index
    %63 = vector.load %arg6[%c0_51, %c0_52] : memref<8x128xf32, #tpu.memory_space<vmem>>, vector<8x128xf32>
    tpu.vector_store %arg6[%c0_51, %c0_52], %62 {strides = array<i32>} : memref<8x128xf32, #tpu.memory_space<vmem>>, vector<8x128xf32>,
    %cst_53 = arith.constant dense<0.000000e+00> : vector<128xf32>
    %64 = vector.multi_reduction <add>, %62, %cst_53 [0] : vector<8x128xf32> to vector<128xf32>
    %65 = vector.shape_cast %64 : vector<128xf32> to vector<1x128xf32>
    %66 = vector.shape_cast %65 : vector<1x128xf32> to vector<1x1x128xf32>
    %c0_54 = arith.constant 0 : index
    %c0_55 = arith.constant 0 : index
    %c0_56 = arith.constant 0 : index
    %67 = vector.load %arg7[%c0_54, %c0_55, %c0_56] : memref<1x2x128xf32, #tpu.memory_space<vmem>>, vector<1x1x128xf32>
    tpu.vector_store %arg7[%c0_54, %c0_55, %c0_56], %66 {strides = array<i32>} : memref<1x2x128xf32, #tpu.memory_space<vmem>>, vector<1x1x128xf32>,
    %68 = arith.mulf %62, %62 : vector<8x128xf32>
    %cst_57 = arith.constant dense<0.000000e+00> : vector<128xf32>
    %69 = vector.multi_reduction <add>, %68, %cst_57 [0] : vector<8x128xf32> to vector<128xf32>
    %70 = vector.shape_cast %69 : vector<128xf32> to vector<1x128xf32>
    %71 = vector.shape_cast %70 : vector<1x128xf32> to vector<1x1x128xf32>
    %c0_58 = arith.constant 0 : index
    %c1_59 = arith.constant 1 : index
    %c0_60 = arith.constant 0 : index
    %72 = vector.load %arg7[%c0_58, %c1_59, %c0_60] : memref<1x2x128xf32, #tpu.memory_space<vmem>>, vector<1x1x128xf32>
    tpu.vector_store %arg7[%c0_58, %c1_59, %c0_60], %71 {strides = array<i32>} : memref<1x2x128xf32, #tpu.memory_space<vmem>>, vector<1x1x128xf32>,
    return
  }
  func.func @transform_1(%arg0: i32, %arg1: i32) -> (i32, i32) {
    %c0_i32 = arith.constant 0 : i32
    %c0_i32_0 = arith.constant 0 : i32
    %c0_i32_1 = arith.constant 0 : i32
    return %c0_i32, %c0_i32_0 : i32, i32
  }
  func.func @transform_2(%arg0: i32, %arg1: i32) -> (i32, i32) {
    %c0_i32 = arith.constant 0 : i32
    %c0_i32_0 = arith.constant 0 : i32
    %c0_i32_1 = arith.constant 0 : i32
    return %c0_i32, %c0_i32_0 : i32, i32
  }
  func.func @transform_3(%arg0: i32, %arg1: i32) -> (i32, i32, i32) {
    %c0_i32 = arith.constant 0 : i32
    %c0_i32_0 = arith.constant 0 : i32
    %c0_i32_1 = arith.constant 0 : i32
    %c0_i32_2 = arith.constant 0 : i32
    return %c0_i32, %c0_i32_0, %c0_i32_1 : i32, i32, i32
  }
  func.func @transform_4(%arg0: i32, %arg1: i32) -> (i32, i32) {
    %c2_i32 = arith.constant 2 : i32
    %0 = arith.muli %arg0, %c2_i32 : i32
    %1 = arith.addi %0, %arg1 : i32
    %c0_i32 = arith.constant 0 : i32
    %c0_i32_0 = arith.constant 0 : i32
    return %1, %c0_i32 : i32, i32
  }
  func.func @transform_5(%arg0: i32, %arg1: i32) -> (i32, i32, i32) {
    %c2_i32 = arith.constant 2 : i32
    %0 = arith.muli %arg0, %c2_i32 : i32
    %1 = arith.addi %0, %arg1 : i32
    %c0_i32 = arith.constant 0 : i32
    %c0_i32_0 = arith.constant 0 : i32
    %c0_i32_1 = arith.constant 0 : i32
    return %1, %c0_i32, %c0_i32_0 : i32, i32, i32
  }
}

module attributes {stable_mosaic.version = 11 : i64} {
  func.func @_bn_relu_kernel(%arg0: i32, %arg1: memref<8x128xf32, #tpu.memory_space<vmem>>, %arg2: memref<1x128xf32, #tpu.memory_space<vmem>>, %arg3: memref<1x128xf32, #tpu.memory_space<vmem>>, %arg4: memref<8x128xf32, #tpu.memory_space<vmem>>) attributes {dimension_semantics = [#tpu.dimension_semantics<parallel>], iteration_bounds = array<i64: 4>, scalar_prefetch = 0 : i64, scratch_operands = 0 : i64, tpu.core_type = #tpu.core_type<tc>, window_params = [{transform_indices = @transform_0, window_bounds = array<i64: 8, 128>}, {pipeline_mode = #tpu.pipeline_mode<synchronous>, transform_indices = @transform_1, window_bounds = array<i64: 1, 128>}, {pipeline_mode = #tpu.pipeline_mode<synchronous>, transform_indices = @transform_2, window_bounds = array<i64: 1, 128>}, {transform_indices = @transform_3, window_bounds = array<i64: 8, 128>}]} {
    %c0 = arith.constant 0 : index
    %c0_0 = arith.constant 0 : index
    %0 = vector.load %arg1[%c0, %c0_0] : memref<8x128xf32, #tpu.memory_space<vmem>>, vector<8x128xf32>
    %c0_1 = arith.constant 0 : index
    %c0_2 = arith.constant 0 : index
    %1 = vector.load %arg2[%c0_1, %c0_2] : memref<1x128xf32, #tpu.memory_space<vmem>>, vector<1x128xf32>
    %2 = vector.broadcast %1 : vector<1x128xf32> to vector<8x128xf32>
    %3 = arith.mulf %0, %2 : vector<8x128xf32>
    %c0_3 = arith.constant 0 : index
    %c0_4 = arith.constant 0 : index
    %4 = vector.load %arg3[%c0_3, %c0_4] : memref<1x128xf32, #tpu.memory_space<vmem>>, vector<1x128xf32>
    %5 = vector.broadcast %4 : vector<1x128xf32> to vector<8x128xf32>
    %6 = arith.addf %3, %5 : vector<8x128xf32>
    %cst = arith.constant 0.000000e+00 : f32
    %7 = vector.broadcast %cst : f32 to vector<8x128xf32>
    %8 = arith.maximumf %6, %7 : vector<8x128xf32>
    %c0_5 = arith.constant 0 : index
    %c0_6 = arith.constant 0 : index
    %9 = vector.load %arg4[%c0_5, %c0_6] : memref<8x128xf32, #tpu.memory_space<vmem>>, vector<8x128xf32>
    tpu.vector_store %arg4[%c0_5, %c0_6], %8 {strides = array<i32>} : memref<8x128xf32, #tpu.memory_space<vmem>>, vector<8x128xf32>,
    return
  }
  func.func @transform_0(%arg0: i32) -> (i32, i32) {
    %c0_i32 = arith.constant 0 : i32
    %c0_i32_0 = arith.constant 0 : i32
    return %arg0, %c0_i32 : i32, i32
  }
  func.func @transform_1(%arg0: i32) -> (i32, i32) {
    %c0_i32 = arith.constant 0 : i32
    %c0_i32_0 = arith.constant 0 : i32
    %c0_i32_1 = arith.constant 0 : i32
    return %c0_i32, %c0_i32_0 : i32, i32
  }
  func.func @transform_2(%arg0: i32) -> (i32, i32) {
    %c0_i32 = arith.constant 0 : i32
    %c0_i32_0 = arith.constant 0 : i32
    %c0_i32_1 = arith.constant 0 : i32
    return %c0_i32, %c0_i32_0 : i32, i32
  }
  func.func @transform_3(%arg0: i32) -> (i32, i32) {
    %c0_i32 = arith.constant 0 : i32
    %c0_i32_0 = arith.constant 0 : i32
    return %arg0, %c0_i32 : i32, i32
  }
}

</mosaic_0001>

<llo_original>
// kernel: tile.27
$region0: #{tile.27}
  #allocation0 [shape = 's32[1]{0}', space=sflag, size = 0x4, scoped, tag = 'scoped memory for tile.27']
  %s0 = inlined_call_operand.vmem [shape: f32[8], index: 0, kind: input, shape index: {}]
  %s1 = inlined_call_operand.vmem [shape: f32[16,8], index: 1, kind: output, shape index: {}]
  // Predicated region
  $region2: #{tile.27} parent=0 // pred_check
    _
  $region3: #{tile.27} parent=0 // pred_check_branch
    %3 = sbr.rel (0) target = $region5
  $region4: #{tile.27} parent=0 // pred_region
    _
  $region5: #{tile.27} parent=0 // pred_fallthru
    _
  %v4 = vld [vmem:[%s0] ss:$0 sm:$0xff]
  %5 = vst [vmem:[%s1] sm:$0xff] %v4
  %s6 = scalar_lea.vmem %s1, 8
  %7 = vst [vmem:[%s6] sm:$0xff] %v4

// kernel: tile.29
$region0: #{tile.29}
  %s0 = inlined_call_operand.vmem [shape: f32[16,8], index: 0, kind: input, shape index: {}]
  %s1 = inlined_call_operand.vmem [shape: f32[1,128], index: 1, kind: output, shape index: {}]
  $region1: #{tile.29} parent=0
    #allocation0 [shape = 'u8[4096]{0}', space=vmem, size = 0x1000, scoped, tag = 'scoped mem for output reshape']
    %v2 = vld [vmem:[%s0] sm:$0x1]
    %vm3 = vcmask 64512
    %4 = vst.msk [vmem:[#allocation0] sm:$0x1] %vm3, %v2
    %s5 = scalar_lea.vmem %s0, 15
    %v6 = vld [vmem:[%s5] sm:$0x1]
    %7 = vrot.lane.b32.xlu0 %v6, 120
    %v8 = vpop.permute.xlu0 %7
    %vm9 = vcmask 1048512
    %10 = vst.msk [vmem:[#allocation0] sm:$0x1] %vm9, %v8
    %s11 = scalar_lea.vmem %s0, 14
    %v12 = vld [vmem:[%s11] sm:$0x1]
    %13 = vrot.lane.b32.xlu0 %v12, 112
    %v14 = vpop.permute.xlu0 %13
    %vm15 = vcmask 982912
    %16 = vst.msk [vmem:[#allocation0] sm:$0x1] %vm15, %v14
    %s17 = scalar_lea.vmem %s0, 13
    %v18 = vld [vmem:[%s17] sm:$0x1]
    %19 = vrot.lane.b32.xlu0 %v18, 104
    %v20 = vpop.permute.xlu0 %19
    %vm21 = vcmask 917312
    %22 = vst.msk [vmem:[#allocation0] sm:$0x1] %vm21, %v20
    %s23 = scalar_lea.vmem %s0, 12
    %v24 = vld [vmem:[%s23] sm:$0x1]
    %25 = vrot.lane.b32.xlu0 %v24, 96
    %v26 = vpop.permute.xlu0 %25
    %vm27 = vcmask 851712
    %28 = vst.msk [vmem:[#allocation0] sm:$0x1] %vm27, %v26
    %s29 = scalar_lea.vmem %s0, 11
    %v30 = vld [vmem:[%s29] sm:$0x1]
    %31 = vrot.lane.b32.xlu0 %v30, 88
    %v32 = vpop.permute.xlu0 %31
    %vm33 = vcmask 786112
    %34 = vst.msk [vmem:[#allocation0] sm:$0x1] %vm33, %v32
    %s35 = scalar_lea.vmem %s0, 10
    %v36 = vld [vmem:[%s35] sm:$0x1]
    %37 = vrot.lane.b32.xlu0 %v36, 80
    %v38 = vpop.permute.xlu0 %37
    %vm39 = vcmask 720512
    %40 = vst.msk [vmem:[#allocation0] sm:$0x1] %vm39, %v38
    %s41 = scalar_lea.vmem %s0, 9
    %v42 = vld [vmem:[%s41] sm:$0x1]
    %43 = vrot.lane.b32.xlu0 %v42, 72
    %v44 = vpop.permute.xlu0 %43
    %vm45 = vcmask 654912
    %46 = vst.msk [vmem:[#allocation0] sm:$0x1] %vm45, %v44
    %s47 = scalar_lea.vmem %s0, 8
    %v48 = vld [vmem:[%s47] sm:$0x1]
    %49 = vrot.lane.b32.xlu0 %v48, 64
    %v50 = vpop.permute.xlu0 %49
    %vm51 = vcmask 589312
    %52 = vst.msk [vmem:[#allocation0] sm:$0x1] %vm51, %v50
    %s53 = scalar_lea.vmem %s0, 7
    %v54 = vld [vmem:[%s53] sm:$0x1]
    %55 = vrot.lane.b32.xlu0 %v54, 56
    %v56 = vpop.permute.xlu0 %55
    %vm57 = vcmask 523712
    %58 = vst.msk [vmem:[#allocation0] sm:$0x1] %vm57, %v56
    %s59 = scalar_lea.vmem %s0, 6
    %v60 = vld [vmem:[%s59] sm:$0x1]
    %61 = vrot.lane.b32.xlu0 %v60, 48
    %v62 = vpop.permute.xlu0 %61
    %vm63 = vcmask 458112
    %64 = vst.msk [vmem:[#allocation0] sm:$0x1] %vm63, %v62
    %s65 = scalar_lea.vmem %s0, 5
    %v66 = vld [vmem:[%s65] sm:$0x1]
    %67 = vrot.lane.b32.xlu0 %v66, 40
    %v68 = vpop.permute.xlu0 %67
    %vm69 = vcmask 392512
    %70 = vst.msk [vmem:[#allocation0] sm:$0x1] %vm69, %v68
    %s71 = scalar_lea.vmem %s0, 4
    %v72 = vld [vmem:[%s71] sm:$0x1]
    %73 = vrot.lane.b32.xlu0 %v72, 32
    %v74 = vpop.permute.xlu0 %73
    %vm75 = vcmask 326912
    %76 = vst.msk [vmem:[#allocation0] sm:$0x1] %vm75, %v74
    %s77 = scalar_lea.vmem %s0, 3
    %v78 = vld [vmem:[%s77] sm:$0x1]
    %79 = vrot.lane.b32.xlu0 %v78, 24
    %v80 = vpop.permute.xlu0 %79
    %vm81 = vcmask 261312
    %82 = vst.msk [vmem:[#allocation0] sm:$0x1] %vm81, %v80
    %s83 = scalar_lea.vmem %s0, 2
    %v84 = vld [vmem:[%s83] sm:$0x1]
    %85 = vrot.lane.b32.xlu0 %v84, 16
    %v86 = vpop.permute.xlu0 %85
    %vm87 = vcmask 195712
    %88 = vst.msk [vmem:[#allocation0] sm:$0x1] %vm87, %v86
    %s89 = scalar_lea.vmem %s0, 1
    %v90 = vld [vmem:[%s89] sm:$0x1]
    %91 = vrot.lane.b32.xlu0 %v90, 8
    %v92 = vpop.permute.xlu0 %91
    %vm93 = vcmask 130112
    %94 = vst.msk [vmem:[#allocation0] sm:$0x1] %vm93, %v92
    %s96 = sshllo.u32 0, 1
    %v98 = vld [vmem:[#allocation0] sm:%s96]
    %s99 = sshllo.u32 0, 1
    %100 = vst [vmem:[%s1] sm:%s99] %v98

// kernel: double_conv.3
$region0: #{double_conv.3}
  #allocation0 [shape = 'u32[]', space=smem, size = 0x4, offset = 0x4, fixed_abs, tag = 'smem constant byte address 0x4 - core index']
  #allocation1 [shape = 'u32[144,128]{1,0:T(1,128)}', space=vmem, size = 0x12000, scoped, tag = 'internal scratch']
  #allocation2 [shape = 'f32[10,64]{1,0:T(8,128)}', space=vmem, size = 0x2000, scoped, tag = 'scratch operand']
  #allocation3 [shape = 's32[3]{0}', space=sflag, size = 0xc, scoped, tag = 'scratch operand']
  #allocation4 [shape = 's32[]', space=sflag, size = 0x4, offset = 0, fixed_abs, tag = 'sflag constant byte address 0x0 - dummy sync flag']
  #allocation5 [shape = 's32[]', space=sflag, size = 0x4, offset = 0, fixed_abs, tag = 'sflag constant byte address 0x0 - dummy sync flag']
  #allocation6 [shape = 's32[]', space=sflag, size = 0x4, offset = 0, fixed_abs, tag = 'sflag constant byte address 0x0 - dummy sync flag']
  %s0 = inlined_call_operand.vmem [shape: f32[32,64], index: 0, kind: input, shape index: {}]
  %s1 = inlined_call_operand.vmem [shape: f32[1,64], index: 1, kind: input, shape index: {}]
  %s2 = inlined_call_operand.vmem [shape: f32[1,64], index: 2, kind: input, shape index: {}]
  %s3 = inlined_call_operand.vmem [shape: f32[3,64,128], index: 3, kind: input, shape index: {}]
  %s4 = inlined_call_operand.vmem [shape: f32[32,128], index: 4, kind: output, shape index: {0}]
  %s5 = inlined_call_operand.vmem [shape: f32[4,2,128], index: 5, kind: output, shape index: {1}]
  %6 = xla_tuple %s4, %s5
  %s7 = sld [smem:[#allocation0]]
  $region155: #{double_conv.3} parent=0
    _
  %s9 = ssub.s32 1, %s7
  %s10 = scalar_select 0, %s9, %s7
  loop: start=0, step=1, limit=6
  $region2: #{double_conv.3} parent=0 // loop_pre_header
    _
  $region3: #{double_conv.3} parent=0 // loop_header
    %s12 = sphi 0, %s16
    %p13 = scmp.ge.s32.totalorder %s12, 6
    %s19 = sphi 0, %s31
    %s20 = sphi 0, %s27
    %s21 = sphi 0, %s19
    %s22 = sphi 0, %s20
    %s23 = sphi 0, %s21
    %s24 = sphi 0, %s22
    %s32 = sphi 0, %s32
    %s34 = sphi 0, %s32
    %s35 = sphi 0, %s34
    %s49 = sphi 0, %s35
    %s53 = sphi 0, %s53
    %s55 = sphi 0, %s53
    %s56 = sphi 0, %s55
    %s70 = sphi 0, %s56
    %s74 = sphi 0, %s74
    %s76 = sphi 0, %s74
    %s77 = sphi 0, %s76
    %s91 = sphi 0, %s77
    %s101 = sphi 0, %s103
    %s104 = sphi 0, %s101
    %s105 = sphi 0, %s104
    %s121 = sphi 0, %s105
    %s131 = sphi 0, %s133
    %s134 = sphi 0, %s131
    %s135 = sphi 0, %s134
    %s151 = sphi 0, %s135
  $region4: #{double_conv.3} parent=0 // loop_header_branch
    %15 = sbr.rel (%p13) target = $region8
  $region5: #{double_conv.3} parent=0 // loop_body
    %s17 = ssub.s32 %s12, 1
    %s18 = ssub.s32 %s12, 2
    %s25 = sadd.s32 1, %s20
    %p26 = scmp.ge.s32.totalorder %s25, 2
    %s27 = scalar_select %p26, 0, %s25
    %s28 = sadd.s32 1, %s19
    %s29 = scalar_select %p26, %s28, %s19
    %p30 = scmp.ge.s32.totalorder %s29, 2
    %s31 = scalar_select %p30, 0, %s29
    %s33 = sadd.s32 %s32, 1
    %p36 = scmp.eq.s32.totalorder %s12, 3
    %p37 = scmp.ne.s32.totalorder %s32, %s34
    %p38 = scmp.eq.s32.totalorder %s12, 0
    %p39 = por %p37, %p38
    %p40 = scmp.ne.s32.totalorder %s32, %s34
    %p41 = scmp.eq.s32.totalorder %s17, 3
    %p42 = por %p40, %p41
    %p43 = scmp.ne.s32.totalorder %s34, %s35
    %p44 = scmp.eq.s32.totalorder %s17, 0
    %p45 = por %p43, %p44
    %p46 = scmp.ne.s32.totalorder %s34, %s35
    %p47 = scmp.eq.s32.totalorder %s18, 3
    %p48 = por %p46, %p47
    %p50 = scmp.ne.s32.totalorder %s35, %s49
    %p51 = scmp.eq.s32.totalorder %s18, 0
    %p52 = por %p50, %p51
    %s54 = sadd.s32 %s53, 1
    %p57 = scmp.eq.s32.totalorder %s12, 3
    %p58 = scmp.ne.s32.totalorder %s53, %s55
    %p59 = scmp.eq.s32.totalorder %s12, 0
    %p60 = por %p58, %p59
    %p61 = scmp.ne.s32.totalorder %s53, %s55
    %p62 = scmp.eq.s32.totalorder %s17, 3
    %p63 = por %p61, %p62
    %p64 = scmp.ne.s32.totalorder %s55, %s56
    %p65 = scmp.eq.s32.totalorder %s17, 0
    %p66 = por %p64, %p65
    %p67 = scmp.ne.s32.totalorder %s55, %s56
    %p68 = scmp.eq.s32.totalorder %s18, 3
    %p69 = por %p67, %p68
    %p71 = scmp.ne.s32.totalorder %s56, %s70
    %p72 = scmp.eq.s32.totalorder %s18, 0
    %p73 = por %p71, %p72
    %s75 = sadd.s32 %s74, 1
    %p78 = scmp.eq.s32.totalorder %s12, 3
    %p79 = scmp.ne.s32.totalorder %s74, %s76
    %p80 = scmp.eq.s32.totalorder %s12, 0
    %p81 = por %p79, %p80
    %p82 = scmp.ne.s32.totalorder %s74, %s76
    %p83 = scmp.eq.s32.totalorder %s17, 3
    %p84 = por %p82, %p83
    %p85 = scmp.ne.s32.totalorder %s76, %s77
    %p86 = scmp.eq.s32.totalorder %s17, 0
    %p87 = por %p85, %p86
    %p88 = scmp.ne.s32.totalorder %s76, %s77
    %p89 = scmp.eq.s32.totalorder %s18, 3
    %p90 = por %p88, %p89
    %p92 = scmp.ne.s32.totalorder %s77, %s91
    %p93 = scmp.eq.s32.totalorder %s18, 0
    %p94 = por %p92, %p93
    %s95 = smul.u32 %s19, 2
    %s96 = sadd.s32 %s95, %s20
    %s97 = smul.u32 %s31, 2
    %s98 = sadd.s32 %s97, %s27
    %s99 = ssub.s32 %s96, %s98
    %p100 = scmp.eq.s32.totalorder %s99, 0
    %s102 = sadd.s32 %s101, 1
    %s103 = scalar_select %p100, %s101, %s102
    %p106 = pneg %p100
    %p107 = scmp.eq.s32.totalorder %s12, 3
    %p108 = por %p106, %p107
    %p109 = scmp.ne.s32.totalorder %s101, %s104
    %p110 = scmp.eq.s32.totalorder %s12, 0
    %p111 = por %p109, %p110
    %p112 = scmp.ne.s32.totalorder %s101, %s104
    %p113 = scmp.eq.s32.totalorder %s17, 3
    %p114 = por %p112, %p113
    %p115 = scmp.ne.s32.totalorder %s104, %s105
    %p116 = scmp.eq.s32.totalorder %s17, 0
    %p117 = por %p115, %p116
    %p118 = scmp.ne.s32.totalorder %s104, %s105
    %p119 = scmp.eq.s32.totalorder %s18, 3
    %p120 = por %p118, %p119
    %p122 = scmp.ne.s32.totalorder %s105, %s121
    %p123 = scmp.eq.s32.totalorder %s18, 0
    %p124 = por %p122, %p123
    %s125 = smul.u32 %s19, 2
    %s126 = sadd.s32 %s125, %s20
    %s127 = smul.u32 %s31, 2
    %s128 = sadd.s32 %s127, %s27
    %s129 = ssub.s32 %s126, %s128
    %p130 = scmp.eq.s32.totalorder %s129, 0
    %s132 = sadd.s32 %s131, 1
    %s133 = scalar_select %p130, %s131, %s132
    %p136 = pneg %p130
    %p137 = scmp.eq.s32.totalorder %s12, 3
    %p138 = por %p136, %p137
    %p139 = scmp.ne.s32.totalorder %s131, %s134
    %p140 = scmp.eq.s32.totalorder %s12, 0
    %p141 = por %p139, %p140
    %p142 = scmp.ne.s32.totalorder %s131, %s134
    %p143 = scmp.eq.s32.totalorder %s17, 3
    %p144 = por %p142, %p143
    %p145 = scmp.ne.s32.totalorder %s134, %s135
    %p146 = scmp.eq.s32.totalorder %s17, 0
    %p147 = por %p145, %p146
    %p148 = scmp.ne.s32.totalorder %s134, %s135
    %p149 = scmp.eq.s32.totalorder %s18, 3
    %p150 = por %p148, %p149
    %p152 = scmp.ne.s32.totalorder %s135, %s151
    %p153 = scmp.eq.s32.totalorder %s18, 0
    %p154 = por %p152, %p153
    %p155 = scmp.le.s32.totalorder 1, %s12
    %p156 = scmp.lt.s32.totalorder %s12, 5
    %p157 = pnand %p155, %p156
    %p158 = pneg %p157
    // Predicated region
    $region9: #{double_conv.3} parent=5 // pred_check
      _
    $region10: #{double_conv.3} parent=5 // pred_check_branch
      %160 = sbr.rel (%p157) target = $region12
    $region11: #{double_conv.3} parent=5 // pred_region
      %s161 = ssub.s32 %s12, 1
      // Predicated region
      $region13: #{double_conv.3} parent=11 // pred_check
        %p162 = pneg %p45
      $region14: #{double_conv.3} parent=11 // pred_check_branch
        %164 = sbr.rel (%p162) target = $region16
      $region15: #{double_conv.3} parent=11 // pred_region
        _
      $region16: #{double_conv.3} parent=11 // pred_fallthru
        _
      // Predicated region
      $region17: #{double_conv.3} parent=11 // pred_check
        %p165 = pneg %p66
      $region18: #{double_conv.3} parent=11 // pred_check_branch
        %167 = sbr.rel (%p165) target = $region20
      $region19: #{double_conv.3} parent=11 // pred_region
        _
      $region20: #{double_conv.3} parent=11 // pred_fallthru
        _
      // Predicated region
      $region21: #{double_conv.3} parent=11 // pred_check
        %p168 = pneg %p87
      $region22: #{double_conv.3} parent=11 // pred_check_branch
        %170 = sbr.rel (%p168) target = $region24
      $region23: #{double_conv.3} parent=11 // pred_region
        _
      $region24: #{double_conv.3} parent=11 // pred_fallthru
        _
    $region12: #{double_conv.3} parent=5 // pred_fallthru
      _
    %p171 = scmp.lt.s32.totalorder %s12, 4
    // Predicated region
    $region25: #{double_conv.3} parent=5 // pred_check
      %p172 = pneg %p171
    $region26: #{double_conv.3} parent=5 // pred_check_branch
      %174 = sbr.rel (%p172) target = $region28
    $region27: #{double_conv.3} parent=5 // pred_region
      _
    $region28: #{double_conv.3} parent=5 // pred_fallthru
      _
    %p175 = scmp.le.s32.totalorder 1, %s12
    %p176 = scmp.lt.s32.totalorder %s12, 5
    %p177 = pnand %p175, %p176
    %p178 = pneg %p177
    // Predicated region
    $region29: #{double_conv.3} parent=5 // pred_check
      _
    $region30: #{double_conv.3} parent=5 // pred_check_branch
      %180 = sbr.rel (%p177) target = $region32
    $region31: #{double_conv.3} parent=5 // pred_region
      %s181 = ssub.s32 %s12, 1
      %p182 = pneg %p45
      %p183 = pneg %p42
      %p184 = pneg %p66
      %p185 = pneg %p63
      %p186 = pneg %p87
      %p187 = pneg %p84
      %p188 = pneg %p117
      %p189 = pneg %p114
      %s190 = smul.u32 %s21, 2
      %s191 = sadd.s32 %s190, %s22
      %p192 = scmp.lt.s32.totalorder %s191, 3
      %s193 = scalar_select %p192, %s191, 3
      %s194 = smul.addr %s193, 8
      %s195 = scalar_lea.vmem %s4, %s194
      %p196 = pneg %p147
      %p197 = pneg %p144
      %s198 = smul.u32 %s21, 2
      %s199 = sadd.s32 %s198, %s22
      %p200 = scmp.lt.s32.totalorder %s199, 3
      %s201 = scalar_select %p200, %s199, 3
      %s202 = smul.addr %s201, 2
      %s203 = scalar_lea.vmem %s5, %s202
      %s204 = smul.u32 %s21, 2
      %s205 = sadd.s32 %s204, %s22
      %p206 = scmp.lt.s32.totalorder %s205, 3
      %s207 = scalar_select %p206, %s205, 3
      %s208 = smul.addr %s207, 8
      %s209 = scalar_lea.vmem %s4, %s208
      %s210 = smul.u32 %s21, 2
      %s211 = sadd.s32 %s210, %s22
      %s212 = smul.u32 %s21, 2
      %s213 = sadd.s32 %s212, %s22
      %p214 = scmp.lt.s32.totalorder %s213, 3
      %s215 = scalar_select %p214, %s213, 3
      %s216 = smul.addr %s215, 2
      %s217 = scalar_lea.vmem %s5, %s216
      %s218 = smul.u32 %s21, 2
      %s219 = sadd.s32 %s218, %s22
      %s220 = smul.u32 %s21, 16
      %s221 = smul.u32 %s22, 8
      %s222 = sadd.s32 %s220, %s221
      %s223 = ssub.s32 %s222, 1
      %p224 = scmp.gt.s32.totalorder %s223, 0
      %s225 = scalar_select %p224, %s223, 0
      %s226 = sadd.s32 %s222, 8
      %p227 = scmp.lt.s32.totalorder %s226, 31
      %s228 = scalar_select %p227, %s226, 31
      %s229 = scalar_lea.vmem %s0, %s222
      %s230 = scalar_lea.vmem [#allocation2], 1
      %p232 = scmp.lt.u32.totalorder 8, 8
      %p233 = pneg %p232
      // Predicated region
      $region33: #{double_conv.3} parent=31 // pred_check
        _
      $region34: #{double_conv.3} parent=31 // pred_check_branch
        %235 = sbr.rel (%p232) target = $region36
      $region35: #{double_conv.3} parent=31 // pred_region
        %s250 = sand.u32 8, 7
        %p251 = scmp.eq.s32.totalorder %s250, 0
        // Predicated region
        $region48: #{double_conv.3} parent=35 // pred_check
          %p252 = pneg %p251
        $region49: #{double_conv.3} parent=35 // pred_check_branch
          %254 = sbr.rel (%p252) target = $region51
        $region50: #{double_conv.3} parent=35 // pred_region
          loop: start=0, step=1, limit=1
          $region52: #{double_conv.3} parent=50 // loop_pre_header
            _
          $region53: #{double_conv.3} parent=50 // loop_header
            %s256 = sphi 0, %s260
            %p257 = scmp.ge.s32.totalorder %s256, 1
            %s261 = sphi %s229, %s229
            %s262 = sphi %s230, %s230
          $region54: #{double_conv.3} parent=50 // loop_header_branch
            %259 = sbr.rel (%p257) target = $region58
          $region55: #{double_conv.3} parent=50 // loop_body
            %v263 = vld [vmem:[%s261] sm:$0xff]
            %264 = vst [vmem:[%s262] sm:$0xff] %v263
          $region56: #{double_conv.3} parent=50 // loop_footer
            %s260 = sadd.s32 1, %s256
          $region57: #{double_conv.3} parent=50 // loop_footer_branch
            %255 = sbr.rel target = $region53
          $region58: #{double_conv.3} parent=50 // loop_exit
            _
        $region51: #{double_conv.3} parent=35 // pred_fallthru
          _
        %p265 = pneg %p251
        // Predicated region
        $region59: #{double_conv.3} parent=35 // pred_check
          _
        $region60: #{double_conv.3} parent=35 // pred_check_branch
          %267 = sbr.rel (%p251) target = $region62
        $region61: #{double_conv.3} parent=35 // pred_region
          %s268 = sand.u32 8, 7
        $region62: #{double_conv.3} parent=35 // pred_fallthru
          _
      $region36: #{double_conv.3} parent=31 // pred_fallthru
        _
      // Predicated region
      $region37: #{double_conv.3} parent=31 // pred_check
        %p236 = pneg %p232
      $region38: #{double_conv.3} parent=31 // pred_check_branch
        %238 = sbr.rel (%p236) target = $region40
      $region39: #{double_conv.3} parent=31 // pred_region
        %s239 = sshllo.u32 0, 8
        loop: start=0, step=1, limit=1
        $region41: #{double_conv.3} parent=39 // loop_pre_header
          _
        $region42: #{double_conv.3} parent=39 // loop_header
          %s241 = sphi 0, %s245
          %p242 = scmp.ge.s32.totalorder %s241, 1
          %s246 = sphi %s229, %s229
          %s247 = sphi %s230, %s230
        $region43: #{double_conv.3} parent=39 // loop_header_branch
          %244 = sbr.rel (%p242) target = $region47
        $region44: #{double_conv.3} parent=39 // loop_body
          %v248 = vld [vmem:[%s246] sm:%s239]
          %249 = vst [vmem:[%s247] sm:%s239] %v248
        $region45: #{double_conv.3} parent=39 // loop_footer
          %s245 = sadd.s32 1, %s241
        $region46: #{double_conv.3} parent=39 // loop_footer_branch
          %240 = sbr.rel target = $region42
        $region47: #{double_conv.3} parent=39 // loop_exit
          _
      $region40: #{double_conv.3} parent=31 // pred_fallthru
        _
      // Predicated region
      $region63: #{double_conv.3} parent=31 // pred_check
        _
      $region64: #{double_conv.3} parent=31 // pred_check_branch
        %271 = sbr.rel (0) target = $region66
      $region65: #{double_conv.3} parent=31 // pred_region
        %272 = vsyncadd [#allocation3], 128
      $region66: #{double_conv.3} parent=31 // pred_fallthru
        _
      %s273 = scalar_lea.vmem %s0, %s225
      %s274 = scalar_lea.sflag [#allocation3], 1
      %p276 = scmp.lt.u32.totalorder 1, 8
      %p277 = pneg %p276
      // Predicated region
      $region67: #{double_conv.3} parent=31 // pred_check
        _
      $region68: #{double_conv.3} parent=31 // pred_check_branch
        %279 = sbr.rel (%p276) target = $region70
      $region69: #{double_conv.3} parent=31 // pred_region
        %s294 = sand.u32 1, 7
        %p295 = scmp.eq.s32.totalorder %s294, 0
        %p296 = pneg %p295
        // Predicated region
        $region82: #{double_conv.3} parent=69 // pred_check
          _
        $region83: #{double_conv.3} parent=69 // pred_check_branch
          %298 = sbr.rel (%p295) target = $region85
        $region84: #{double_conv.3} parent=69 // pred_region
          %s299 = sand.u32 1, 7
          %s300 = ssub.s32 1, %s299
          %s301 = scalar_lea.vmem %s273, %s300
          %s302 = ssub.s32 1, %s299
          %s303 = scalar_lea.vmem [#allocation2], %s302
          %s304 = sshllo.u32 0, %s299
          loop: start=0, step=1, limit=1
          $region86: #{double_conv.3} parent=84 // loop_pre_header
            _
          $region87: #{double_conv.3} parent=84 // loop_header
            %s306 = sphi 0, %s310
            %p307 = scmp.ge.s32.totalorder %s306, 1
            %s311 = sphi %s301, %s301
            %s312 = sphi %s303, %s303
          $region88: #{double_conv.3} parent=84 // loop_header_branch
            %309 = sbr.rel (%p307) target = $region92
          $region89: #{double_conv.3} parent=84 // loop_body
            %v313 = vld [vmem:[%s311] sm:%s304]
            %314 = vst [vmem:[%s312] sm:%s304] %v313
          $region90: #{double_conv.3} parent=84 // loop_footer
            %s310 = sadd.s32 1, %s306
          $region91: #{double_conv.3} parent=84 // loop_footer_branch
            %305 = sbr.rel target = $region87
          $region92: #{double_conv.3} parent=84 // loop_exit
            _
        $region85: #{double_conv.3} parent=69 // pred_fallthru
          _
      $region70: #{double_conv.3} parent=31 // pred_fallthru
        _
      // Predicated region
      $region71: #{double_conv.3} parent=31 // pred_check
        %p280 = pneg %p276
      $region72: #{double_conv.3} parent=31 // pred_check_branch
        %282 = sbr.rel (%p280) target = $region74
      $region73: #{double_conv.3} parent=31 // pred_region
        %s283 = sshllo.u32 0, 1
        loop: start=0, step=1, limit=1
        $region75: #{double_conv.3} parent=73 // loop_pre_header
          _
        $region76: #{double_conv.3} parent=73 // loop_header
          %s285 = sphi 0, %s289
          %p286 = scmp.ge.s32.totalorder %s285, 1
          %s290 = sphi %s273, %s273
          %s291 = sphi [#allocation2], [#allocation2]
        $region77: #{double_conv.3} parent=73 // loop_header_branch
          %288 = sbr.rel (%p286) target = $region81
        $region78: #{double_conv.3} parent=73 // loop_body
          %v292 = vld [vmem:[%s290] sm:%s283]
          %293 = vst [vmem:[%s291] sm:%s283] %v292
        $region79: #{double_conv.3} parent=73 // loop_footer
          %s289 = sadd.s32 1, %s285
        $region80: #{double_conv.3} parent=73 // loop_footer_branch
          %284 = sbr.rel target = $region76
        $region81: #{double_conv.3} parent=73 // loop_exit
          _
      $region74: #{double_conv.3} parent=31 // pred_fallthru
        _
      // Predicated region
      $region93: #{double_conv.3} parent=31 // pred_check
        _
      $region94: #{double_conv.3} parent=31 // pred_check_branch
        %317 = sbr.rel (0) target = $region96
      $region95: #{double_conv.3} parent=31 // pred_region
        %318 = vsyncadd %s274, 16
      $region96: #{double_conv.3} parent=31 // pred_fallthru
        _
      %s319 = scalar_lea.vmem %s0, %s228
      %s320 = scalar_lea.vmem [#allocation2], 9
      %s321 = scalar_lea.sflag [#allocation3], 2
      %p323 = scmp.lt.u32.totalorder 1, 8
      %p324 = pneg %p323
      // Predicated region
      $region97: #{double_conv.3} parent=31 // pred_check
        _
      $region98: #{double_conv.3} parent=31 // pred_check_branch
        %326 = sbr.rel (%p323) target = $region100
      $region99: #{double_conv.3} parent=31 // pred_region
        %s341 = sand.u32 1, 7
        %p342 = scmp.eq.s32.totalorder %s341, 0
        %p343 = pneg %p342
        // Predicated region
        $region112: #{double_conv.3} parent=99 // pred_check
          _
        $region113: #{double_conv.3} parent=99 // pred_check_branch
          %345 = sbr.rel (%p342) target = $region115
        $region114: #{double_conv.3} parent=99 // pred_region
          %s346 = sand.u32 1, 7
          %s347 = ssub.s32 1, %s346
          %s348 = scalar_lea.vmem %s319, %s347
          %s349 = ssub.s32 1, %s346
          %s350 = scalar_lea.vmem %s320, %s349 [#allocation2]
          %s351 = sshllo.u32 0, %s346
          loop: start=0, step=1, limit=1
          $region116: #{double_conv.3} parent=114 // loop_pre_header
            _
          $region117: #{double_conv.3} parent=114 // loop_header
            %s353 = sphi 0, %s357
            %p354 = scmp.ge.s32.totalorder %s353, 1
            %s358 = sphi %s348, %s348
            %s359 = sphi %s350, %s350
          $region118: #{double_conv.3} parent=114 // loop_header_branch
            %356 = sbr.rel (%p354) target = $region122
          $region119: #{double_conv.3} parent=114 // loop_body
            %v360 = vld [vmem:[%s358] sm:%s351]
            %361 = vst [vmem:[%s359] sm:%s351] %v360
          $region120: #{double_conv.3} parent=114 // loop_footer
            %s357 = sadd.s32 1, %s353
          $region121: #{double_conv.3} parent=114 // loop_footer_branch
            %352 = sbr.rel target = $region117
          $region122: #{double_conv.3} parent=114 // loop_exit
            _
        $region115: #{double_conv.3} parent=99 // pred_fallthru
          _
      $region100: #{double_conv.3} parent=31 // pred_fallthru
        _
      // Predicated region
      $region101: #{double_conv.3} parent=31 // pred_check
        %p327 = pneg %p323
      $region102: #{double_conv.3} parent=31 // pred_check_branch
        %329 = sbr.rel (%p327) target = $region104
      $region103: #{double_conv.3} parent=31 // pred_region
        %s330 = sshllo.u32 0, 1
        loop: start=0, step=1, limit=1
        $region105: #{double_conv.3} parent=103 // loop_pre_header
          _
        $region106: #{double_conv.3} parent=103 // loop_header
          %s332 = sphi 0, %s336
          %p333 = scmp.ge.s32.totalorder %s332, 1
          %s337 = sphi %s319, %s319
          %s338 = sphi %s320, %s320
        $region107: #{double_conv.3} parent=103 // loop_header_branch
          %335 = sbr.rel (%p333) target = $region111
        $region108: #{double_conv.3} parent=103 // loop_body
          %v339 = vld [vmem:[%s337] sm:%s330]
          %340 = vst [vmem:[%s338] sm:%s330] %v339
        $region109: #{double_conv.3} parent=103 // loop_footer
          %s336 = sadd.s32 1, %s332
        $region110: #{double_conv.3} parent=103 // loop_footer_branch
          %331 = sbr.rel target = $region106
        $region111: #{double_conv.3} parent=103 // loop_exit
          _
      $region104: #{double_conv.3} parent=31 // pred_fallthru
        _
      // Predicated region
      $region123: #{double_conv.3} parent=31 // pred_check
        _
      $region124: #{double_conv.3} parent=31 // pred_check_branch
        %364 = sbr.rel (0) target = $region126
      $region125: #{double_conv.3} parent=31 // pred_region
        %365 = vsyncadd %s321, 16
      $region126: #{double_conv.3} parent=31 // pred_fallthru
        _
      %s366 = smul.u32 8, 1
      %s367 = sshll.u32 %s366, 4
      %368 = dma.done [#allocation3], %s367
      %s369 = smul.u32 1, 1
      %s370 = sshll.u32 %s369, 4
      %371 = dma.done %s274, %s370
      %s372 = sshll.u32 %s369, 4
      %373 = dma.done %s321, %s372
      %p374 = scmp.eq.s32.totalorder %s22, 0
      // Predicated region
      $region127: #{double_conv.3} parent=31 // pred_check
        %p375 = pneg %p374
      $region128: #{double_conv.3} parent=31 // pred_check_branch
        %377 = sbr.rel (%p375) target = $region130
      $region129: #{double_conv.3} parent=31 // pred_region
        %vm378 = vcmask 516096
        %379 = vst.msk [vmem:[#allocation2] sm:$0x1] %vm378, 0.0
      $region130: #{double_conv.3} parent=31 // pred_fallthru
        _
      %p380 = scmp.eq.s32.totalorder %s22, 1
      // Predicated region
      $region131: #{double_conv.3} parent=31 // pred_check
        %p381 = pneg %p380
      $region132: #{double_conv.3} parent=31 // pred_check_branch
        %383 = sbr.rel (%p381) target = $region134
      $region133: #{double_conv.3} parent=31 // pred_region
        %vm384 = vcmask 516096
        %385 = vst.msk [vmem:[#allocation2 + $0x9] sm:$0x1] %vm384, 0.0
      $region134: #{double_conv.3} parent=31 // pred_fallthru
        _
      %v386 = vld [vmem:[#allocation2] sm:$0xff]
      %v387 = vld [vmem:[%s3] sm:$0xff]
      %v388 = vld [vmem:[%s3 + $0x8] sm:$0xff]
      %v389 = vld [vmem:[%s3 + $0x10] sm:$0xff]
      %v390 = vld [vmem:[%s3 + $0x18] sm:$0xff]
      %v391 = vld [vmem:[%s3 + $0x20] sm:$0xff]
      %v392 = vld [vmem:[%s3 + $0x28] sm:$0xff]
      %v393 = vld [vmem:[%s3 + $0x30] sm:$0xff]
      %v394 = vld [vmem:[%s3 + $0x38] sm:$0xff]
      %v395 = vld [vmem:[#allocation2 + $0x1] sm:$0xff]
      %s396 = scalar_lea.vmem %s3, 64
      %v397 = vld [vmem:[%s396] sm:$0xff]
      %v398 = vld [vmem:[%s396 + $0x8] sm:$0xff]
      %v399 = vld [vmem:[%s396 + $0x10] sm:$0xff]
      %v400 = vld [vmem:[%s396 + $0x18] sm:$0xff]
      %v401 = vld [vmem:[%s396 + $0x20] sm:$0xff]
      %v402 = vld [vmem:[%s396 + $0x28] sm:$0xff]
      %v403 = vld [vmem:[%s396 + $0x30] sm:$0xff]
      %v404 = vld [vmem:[%s396 + $0x38] sm:$0xff]
      %vm405 = vcmask 523264
      %v407 = vsel %vm405, %v395, 0
      %409 = vmatprep.subr.mxu0 0.0
      %410 = vmatpush1.msra.mxu0 %v397
      %411 = vmatprep.subr.mxu0 0.0
      %412 = vmatpush1.msra.mxu0 %v398
      %413 = vmatprep.subr.mxu0 0.0
      %414 = vmatpush1.msra.mxu0 %v399
      %415 = vmatprep.subr.mxu0 0.0
      %416 = vmatpush1.msra.mxu0 %v400
      %417 = vmatprep.subr.mxu0 0.0
      %418 = vmatpush1.msra.mxu0 %v401
      %419 = vmatprep.subr.mxu0 0.0
      %420 = vmatpush1.msra.mxu0 %v402
      %421 = vmatprep.subr.mxu0 0.0
      %422 = vmatpush1.msra.mxu0 %v403
      %423 = vmatprep.subr.mxu0 0.0
      %424 = vmatpush1.msra.mxu0 %v404
      %425 = vmatprep.subr.mxu0 0.0
      %426 = vmatpush1.msra.mxu0 0.0
      %427 = vmatprep.subr.mxu0 0.0
      %428 = vmatpush1.msra.mxu0 0.0
      %429 = vmatprep.subr.mxu0 0.0
      %430 = vmatpush1.msra.mxu0 0.0
      %431 = vmatprep.subr.mxu0 0.0
      %432 = vmatpush1.msra.mxu0 0.0
      %433 = vmatprep.subr.mxu0 0.0
      %434 = vmatpush1.msra.mxu0 0.0
      %435 = vmatprep.subr.mxu0 0.0
      %436 = vmatpush1.msra.mxu0 0.0
      %437 = vmatprep.subr.mxu0 0.0
      %438 = vmatpush1.msra.mxu0 0.0
      %439 = vmatprep.subr.mxu0 0.0
      %440 = vmatpush1.msra.mxu0 0.0
      %441 = vmatprep.subr.mxu0 0.0
      %442 = vmatpush1.msra.mxu0 0.0
      %443 = vmatprep.subr.mxu0 0.0
      %444 = vmatpush1.msra.mxu0 0.0
      %445 = vmatprep.subr.mxu0 0.0
      %446 = vmatpush1.msra.mxu0 0.0
      %447 = vmatprep.subr.mxu0 0.0
      %448 = vmatpush1.msra.mxu0 0.0
      %449 = vmatprep.subr.mxu0 0.0
      %450 = vmatpush1.msra.mxu0 0.0
      %451 = vmatprep.subr.mxu0 0.0
      %452 = vmatpush1.msra.mxu0 0.0
      %453 = vmatprep.subr.mxu0 0.0
      %454 = vmatpush1.msra.mxu0 0.0
      %455 = vmatprep.subr.mxu0 0.0
      %456 = vmatpush1.msra.mxu0 0.0
      %457 = vmatprep.subr.mxu0 0.0
      %458 = vmatpush1.msra.mxu0 0.0
      %459 = vmatprep.subr.mxu0 0.0
      %460 = vmatpush1.msra.mxu0 0.0
      %461 = vmatprep.subr.mxu0 0.0
      %462 = vmatpush1.msra.mxu0 0.0
      %463 = vmatprep.subr.mxu0 0.0
      %464 = vmatpush1.msra.mxu0 0.0
      %465 = vmatprep.subr.mxu0 0.0
      %466 = vmatpush1.msra.mxu0 0.0
      %467 = vmatprep.subr.mxu0 0.0
      %468 = vmatpush1.msra.mxu0 0.0
      %469 = vmatprep.subr.mxu0 0.0
      %470 = vmatpush1.msra.mxu0 0.0
      %471 = vmatprep.subr.mxu0 0.0
      %472 = vmatpush1.msra.mxu0 0.0
      %473 = vmatprep.mubr.f32.mxu0 0.0
      %474 = vmatmul.mubr.f32.gmra.mrb[0].mxu0 %v407
      %v475 = vpop.f32.mrb[0].mxu0
      %v476 = vadd.f32 0.0, %v475
      %v477 = vpop.f32.mrb[0].mxu0
      %478 = vdwg.mxu0
      %v480 = vsel %vm405, %v386, 0
      %482 = vmatprep.subr.mxu0 0.0
      %483 = vmatpush1.msra.mxu0 %v387
      %484 = vmatprep.subr.mxu0 0.0
      %485 = vmatpush1.msra.mxu0 %v388
      %486 = vmatprep.subr.mxu0 0.0
      %487 = vmatpush1.msra.mxu0 %v389
      %488 = vmatprep.subr.mxu0 0.0
      %489 = vmatpush1.msra.mxu0 %v390
      %490 = vmatprep.subr.mxu0 0.0
      %491 = vmatpush1.msra.mxu0 %v391
      %492 = vmatprep.subr.mxu0 0.0
      %493 = vmatpush1.msra.mxu0 %v392
      %494 = vmatprep.subr.mxu0 0.0
      %495 = vmatpush1.msra.mxu0 %v393
      %496 = vmatprep.subr.mxu0 0.0
      %497 = vmatpush1.msra.mxu0 %v394
      %498 = vmatprep.subr.mxu0 0.0
      %499 = vmatpush1.msra.mxu0 0.0
      %500 = vmatprep.subr.mxu0 0.0
      %501 = vmatpush1.msra.mxu0 0.0
      %502 = vmatprep.subr.mxu0 0.0
      %503 = vmatpush1.msra.mxu0 0.0
      %504 = vmatprep.subr.mxu0 0.0
      %505 = vmatpush1.msra.mxu0 0.0
      %506 = vmatprep.subr.mxu0 0.0
      %507 = vmatpush1.msra.mxu0 0.0
      %508 = vmatprep.subr.mxu0 0.0
      %509 = vmatpush1.msra.mxu0 0.0
      %510 = vmatprep.subr.mxu0 0.0
      %511 = vmatpush1.msra.mxu0 0.0
      %512 = vmatprep.subr.mxu0 0.0
      %513 = vmatpush1.msra.mxu0 0.0
      %514 = vmatprep.subr.mxu0 0.0
      %515 = vmatpush1.msra.mxu0 0.0
      %516 = vmatprep.subr.mxu0 0.0
      %517 = vmatpush1.msra.mxu0 0.0
      %518 = vmatprep.subr.mxu0 0.0
      %519 = vmatpush1.msra.mxu0 0.0
      %520 = vmatprep.subr.mxu0 0.0
      %521 = vmatpush1.msra.mxu0 0.0
      %522 = vmatprep.subr.mxu0 0.0
      %523 = vmatpush1.msra.mxu0 0.0
      %524 = vmatprep.subr.mxu0 0.0
      %525 = vmatpush1.msra.mxu0 0.0
      %526 = vmatprep.subr.mxu0 0.0
      %527 = vmatpush1.msra.mxu0 0.0
      %528 = vmatprep.subr.mxu0 0.0
      %529 = vmatpush1.msra.mxu0 0.0
      %530 = vmatprep.subr.mxu0 0.0
      %531 = vmatpush1.msra.mxu0 0.0
      %532 = vmatprep.subr.mxu0 0.0
      %533 = vmatpush1.msra.mxu0 0.0
      %534 = vmatprep.subr.mxu0 0.0
      %535 = vmatpush1.msra.mxu0 0.0
      %536 = vmatprep.subr.mxu0 0.0
      %537 = vmatpush1.msra.mxu0 0.0
      %538 = vmatprep.subr.mxu0 0.0
      %539 = vmatpush1.msra.mxu0 0.0
      %540 = vmatprep.subr.mxu0 0.0
      %541 = vmatpush1.msra.mxu0 0.0
      %542 = vmatprep.subr.mxu0 0.0
      %543 = vmatpush1.msra.mxu0 0.0
      %544 = vmatprep.subr.mxu0 0.0
      %545 = vmatpush1.msra.mxu0 0.0
      %546 = vmatprep.mubr.f32.mxu0 0.0
      %547 = vmatmul.mubr.f32.gmra.mrb[0].mxu0 %v480
      %v548 = vpop.f32.mrb[0].mxu0
      %v549 = vadd.f32 %v476, %v548
      %v550 = vpop.f32.mrb[0].mxu0
      %551 = vdwg.mxu0
      %v552 = vld [vmem:[#allocation2 + $0x2] sm:$0xff]
      %s553 = scalar_lea.vmem %s3, 128
      %v554 = vld [vmem:[%s553] sm:$0xff]
      %v555 = vld [vmem:[%s553 + $0x8] sm:$0xff]
      %v556 = vld [vmem:[%s553 + $0x10] sm:$0xff]
      %v557 = vld [vmem:[%s553 + $0x18] sm:$0xff]
      %v558 = vld [vmem:[%s553 + $0x20] sm:$0xff]
      %v559 = vld [vmem:[%s553 + $0x28] sm:$0xff]
      %v560 = vld [vmem:[%s553 + $0x30] sm:$0xff]
      %v561 = vld [vmem:[%s553 + $0x38] sm:$0xff]
      %v563 = vsel %vm405, %v552, 0
      %565 = vmatprep.subr.mxu0 0.0
      %566 = vmatpush1.msra.mxu0 %v554
      %567 = vmatprep.subr.mxu0 0.0
      %568 = vmatpush1.msra.mxu0 %v555
      %569 = vmatprep.subr.mxu0 0.0
      %570 = vmatpush1.msra.mxu0 %v556
      %571 = vmatprep.subr.mxu0 0.0
      %572 = vmatpush1.msra.mxu0 %v557
      %573 = vmatprep.subr.mxu0 0.0
      %574 = vmatpush1.msra.mxu0 %v558
      %575 = vmatprep.subr.mxu0 0.0
      %576 = vmatpush1.msra.mxu0 %v559
      %577 = vmatprep.subr.mxu0 0.0
      %578 = vmatpush1.msra.mxu0 %v560
      %579 = vmatprep.subr.mxu0 0.0
      %580 = vmatpush1.msra.mxu0 %v561
      %581 = vmatprep.subr.mxu0 0.0
      %582 = vmatpush1.msra.mxu0 0.0
      %583 = vmatprep.subr.mxu0 0.0
      %584 = vmatpush1.msra.mxu0 0.0
      %585 = vmatprep.subr.mxu0 0.0
      %586 = vmatpush1.msra.mxu0 0.0
      %587 = vmatprep.subr.mxu0 0.0
      %588 = vmatpush1.msra.mxu0 0.0
      %589 = vmatprep.subr.mxu0 0.0
      %590 = vmatpush1.msra.mxu0 0.0
      %591 = vmatprep.subr.mxu0 0.0
      %592 = vmatpush1.msra.mxu0 0.0
      %593 = vmatprep.subr.mxu0 0.0
      %594 = vmatpush1.msra.mxu0 0.0
      %595 = vmatprep.subr.mxu0 0.0
      %596 = vmatpush1.msra.mxu0 0.0
      %597 = vmatprep.subr.mxu0 0.0
      %598 = vmatpush1.msra.mxu0 0.0
      %599 = vmatprep.subr.mxu0 0.0
      %600 = vmatpush1.msra.mxu0 0.0
      %601 = vmatprep.subr.mxu0 0.0
      %602 = vmatpush1.msra.mxu0 0.0
      %603 = vmatprep.subr.mxu0 0.0
      %604 = vmatpush1.msra.mxu0 0.0
      %605 = vmatprep.subr.mxu0 0.0
      %606 = vmatpush1.msra.mxu0 0.0
      %607 = vmatprep.subr.mxu0 0.0
      %608 = vmatpush1.msra.mxu0 0.0
      %609 = vmatprep.subr.mxu0 0.0
      %610 = vmatpush1.msra.mxu0 0.0
      %611 = vmatprep.subr.mxu0 0.0
      %612 = vmatpush1.msra.mxu0 0.0
      %613 = vmatprep.subr.mxu0 0.0
      %614 = vmatpush1.msra.mxu0 0.0
      %615 = vmatprep.subr.mxu0 0.0
      %616 = vmatpush1.msra.mxu0 0.0
      %617 = vmatprep.subr.mxu0 0.0
      %618 = vmatpush1.msra.mxu0 0.0
      %619 = vmatprep.subr.mxu0 0.0
      %620 = vmatpush1.msra.mxu0 0.0
      %621 = vmatprep.subr.mxu0 0.0
      %622 = vmatpush1.msra.mxu0 0.0
      %623 = vmatprep.subr.mxu0 0.0
      %624 = vmatpush1.msra.mxu0 0.0
      %625 = vmatprep.subr.mxu0 0.0
      %626 = vmatpush1.msra.mxu0 0.0
      %627 = vmatprep.subr.mxu0 0.0
      %628 = vmatpush1.msra.mxu0 0.0
      %629 = vmatprep.mubr.f32.mxu0 0.0
      %630 = vmatmul.mubr.f32.gmra.mrb[0].mxu0 %v563
      %v631 = vpop.f32.mrb[0].mxu0
      %v632 = vadd.f32 0.0, %v631
      %v633 = vpop.f32.mrb[0].mxu0
      %634 = vdwg.mxu0
      %v635 = vadd.f32 %v549, %v632
      %636 = vst [vmem:[%s209] sm:$0xff] %v635
      %v637 = vrot.slane %v635, 4
      %v638 = vadd.f32 %v635, %v637
      %v639 = vrot.slane %v638, 2
      %v640 = vadd.f32 %v638, %v639
      %v641 = vrot.slane %v640, 1
      %v642 = vadd.f32 %v640, %v641
      %643 = vst [vmem:[%s217] sm:$0x1] %v642
      %v644 = vmul.f32 %v635, %v635
      %v645 = vrot.slane %v644, 4
      %v646 = vadd.f32 %v644, %v645
      %v647 = vrot.slane %v646, 2
      %v648 = vadd.f32 %v646, %v647
      %v649 = vrot.slane %v648, 1
      %v650 = vadd.f32 %v648, %v649
      %651 = vst [vmem:[%s217 + $0x1] sm:$0x1] %v650
      %s652 = smul.u32 %s21, 2
      %s653 = sadd.s32 %s652, %s22
      %p654 = scmp.lt.s32.totalorder %s653, 3
      %s655 = scalar_select %p654, %s653, 3
      %s656 = smul.addr %s655, 8
      %s657 = scalar_lea.vmem %s4, %s656
      %s658 = smul.u32 %s21, 2
      %s659 = sadd.s32 %s658, %s22
      %p660 = scmp.lt.s32.totalorder %s659, 3
      %s661 = scalar_select %p660, %s659, 3
      %s662 = smul.addr %s661, 2
      %s663 = scalar_lea.vmem %s5, %s662
      // Predicated region
      $region135: #{double_conv.3} parent=31 // pred_check
        %p664 = pneg %p114
      $region136: #{double_conv.3} parent=31 // pred_check_branch
        %666 = sbr.rel (%p664) target = $region138
      $region137: #{double_conv.3} parent=31 // pred_region
        %s667 = smul.u32 %s21, 2
        %s668 = sadd.s32 %s667, %s22
      $region138: #{double_conv.3} parent=31 // pred_fallthru
        _
      // Predicated region
      $region139: #{double_conv.3} parent=31 // pred_check
        %p669 = pneg %p144
      $region140: #{double_conv.3} parent=31 // pred_check_branch
        %671 = sbr.rel (%p669) target = $region142
      $region141: #{double_conv.3} parent=31 // pred_region
        %s672 = smul.u32 %s21, 2
        %s673 = sadd.s32 %s672, %s22
      $region142: #{double_conv.3} parent=31 // pred_fallthru
        _
    $region32: #{double_conv.3} parent=5 // pred_fallthru
      _
    %p674 = scmp.le.s32.totalorder 2, %s12
    // Predicated region
    $region143: #{double_conv.3} parent=5 // pred_check
      %p675 = pneg %p674
    $region144: #{double_conv.3} parent=5 // pred_check_branch
      %677 = sbr.rel (%p675) target = $region146
    $region145: #{double_conv.3} parent=5 // pred_region
      %s678 = ssub.s32 %s12, 2
      // Predicated region
      $region147: #{double_conv.3} parent=145 // pred_check
        %p679 = pneg %p120
      $region148: #{double_conv.3} parent=145 // pred_check_branch
        %681 = sbr.rel (%p679) target = $region150
      $region149: #{double_conv.3} parent=145 // pred_region
        %s682 = smul.u32 %s23, 2
        %s683 = sadd.s32 %s682, %s24
        %p684 = scmp.lt.s32.totalorder %s683, 3
        %s685 = scalar_select %p684, %s683, 3
        %s686 = smul.addr %s685, 8
        %s687 = scalar_lea.vmem %s4, %s686
      $region150: #{double_conv.3} parent=145 // pred_fallthru
        _
      // Predicated region
      $region151: #{double_conv.3} parent=145 // pred_check
        %p688 = pneg %p150
      $region152: #{double_conv.3} parent=145 // pred_check_branch
        %690 = sbr.rel (%p688) target = $region154
      $region153: #{double_conv.3} parent=145 // pred_region
        %s691 = smul.u32 %s23, 2
        %s692 = sadd.s32 %s691, %s24
        %p693 = scmp.lt.s32.totalorder %s692, 3
        %s694 = scalar_select %p693, %s692, 3
        %s695 = smul.addr %s694, 2
        %s696 = scalar_lea.vmem %s5, %s695
      $region154: #{double_conv.3} parent=145 // pred_fallthru
        _
    $region146: #{double_conv.3} parent=5 // pred_fallthru
      _
  $region6: #{double_conv.3} parent=0 // loop_footer
    %s16 = sadd.s32 1, %s12
  $region7: #{double_conv.3} parent=0 // loop_footer_branch
    %11 = sbr.rel target = $region3
  $region8: #{double_conv.3} parent=0 // loop_exit
    _
  %697 = vsyncmov [#allocation3]
  %s698 = vpop.sfrf %697
  %p699 = scmp.eq.s32.totalorder %s698, 0
  %p700 = pneg %p699
  %702 = shalt.err (%p700)
  %s703 = scalar_lea.sflag [#allocation3], 1
  %704 = vsyncmov %s703
  %s705 = vpop.sfrf %704
  %p706 = scmp.eq.s32.totalorder %s705, 0
  %p707 = pneg %p706
  %709 = shalt.err (%p707)
  %s710 = scalar_lea.sflag [#allocation3], 2
  %711 = vsyncmov %s710
  %s712 = vpop.sfrf %711
  %p713 = scmp.eq.s32.totalorder %s712, 0
  %p714 = pneg %p713
  %716 = shalt.err (%p714)

// kernel: double_conv.4
$region0: #{double_conv.4}
  #allocation0 [shape = 'u32[]', space=smem, size = 0x4, offset = 0x4, fixed_abs, tag = 'smem constant byte address 0x4 - core index']
  #allocation1 [shape = 'u32[144,128]{1,0:T(1,128)}', space=vmem, size = 0x12000, scoped, tag = 'internal scratch']
  #allocation2 [shape = 'f32[10,128]{1,0:T(8,128)}', space=vmem, size = 0x2000, scoped, tag = 'scratch operand']
  #allocation3 [shape = 's32[3]{0}', space=sflag, size = 0xc, scoped, tag = 'scratch operand']
  #allocation4 [shape = 's32[]', space=sflag, size = 0x4, offset = 0, fixed_abs, tag = 'sflag constant byte address 0x0 - dummy sync flag']
  #allocation5 [shape = 's32[]', space=sflag, size = 0x4, offset = 0, fixed_abs, tag = 'sflag constant byte address 0x0 - dummy sync flag']
  #allocation6 [shape = 's32[]', space=sflag, size = 0x4, offset = 0, fixed_abs, tag = 'sflag constant byte address 0x0 - dummy sync flag']
  %s0 = inlined_call_operand.vmem [shape: f32[32,128], index: 0, kind: input, shape index: {}]
  %s1 = inlined_call_operand.vmem [shape: f32[1,128], index: 1, kind: input, shape index: {}]
  %s2 = inlined_call_operand.vmem [shape: f32[1,128], index: 2, kind: input, shape index: {}]
  %s3 = inlined_call_operand.vmem [shape: f32[3,128,128], index: 3, kind: input, shape index: {}]
  %s4 = inlined_call_operand.vmem [shape: f32[32,128], index: 4, kind: output, shape index: {0}]
  %s5 = inlined_call_operand.vmem [shape: f32[4,2,128], index: 5, kind: output, shape index: {1}]
  %6 = xla_tuple %s4, %s5
  %s7 = sld [smem:[#allocation0]]
  $region155: #{double_conv.4} parent=0
    _
  %s9 = ssub.s32 1, %s7
  %s10 = scalar_select 0, %s9, %s7
  loop: start=0, step=1, limit=6
  $region2: #{double_conv.4} parent=0 // loop_pre_header
    _
  $region3: #{double_conv.4} parent=0 // loop_header
    %s12 = sphi 0, %s16
    %p13 = scmp.ge.s32.totalorder %s12, 6
    %s19 = sphi 0, %s31
    %s20 = sphi 0, %s27
    %s21 = sphi 0, %s19
    %s22 = sphi 0, %s20
    %s23 = sphi 0, %s21
    %s24 = sphi 0, %s22
    %s32 = sphi 0, %s32
    %s34 = sphi 0, %s32
    %s35 = sphi 0, %s34
    %s49 = sphi 0, %s35
    %s53 = sphi 0, %s53
    %s55 = sphi 0, %s53
    %s56 = sphi 0, %s55
    %s70 = sphi 0, %s56
    %s74 = sphi 0, %s74
    %s76 = sphi 0, %s74
    %s77 = sphi 0, %s76
    %s91 = sphi 0, %s77
    %s101 = sphi 0, %s103
    %s104 = sphi 0, %s101
    %s105 = sphi 0, %s104
    %s121 = sphi 0, %s105
    %s131 = sphi 0, %s133
    %s134 = sphi 0, %s131
    %s135 = sphi 0, %s134
    %s151 = sphi 0, %s135
  $region4: #{double_conv.4} parent=0 // loop_header_branch
    %15 = sbr.rel (%p13) target = $region8
  $region5: #{double_conv.4} parent=0 // loop_body
    %s17 = ssub.s32 %s12, 1
    %s18 = ssub.s32 %s12, 2
    %s25 = sadd.s32 1, %s20
    %p26 = scmp.ge.s32.totalorder %s25, 2
    %s27 = scalar_select %p26, 0, %s25
    %s28 = sadd.s32 1, %s19
    %s29 = scalar_select %p26, %s28, %s19
    %p30 = scmp.ge.s32.totalorder %s29, 2
    %s31 = scalar_select %p30, 0, %s29
    %s33 = sadd.s32 %s32, 1
    %p36 = scmp.eq.s32.totalorder %s12, 3
    %p37 = scmp.ne.s32.totalorder %s32, %s34
    %p38 = scmp.eq.s32.totalorder %s12, 0
    %p39 = por %p37, %p38
    %p40 = scmp.ne.s32.totalorder %s32, %s34
    %p41 = scmp.eq.s32.totalorder %s17, 3
    %p42 = por %p40, %p41
    %p43 = scmp.ne.s32.totalorder %s34, %s35
    %p44 = scmp.eq.s32.totalorder %s17, 0
    %p45 = por %p43, %p44
    %p46 = scmp.ne.s32.totalorder %s34, %s35
    %p47 = scmp.eq.s32.totalorder %s18, 3
    %p48 = por %p46, %p47
    %p50 = scmp.ne.s32.totalorder %s35, %s49
    %p51 = scmp.eq.s32.totalorder %s18, 0
    %p52 = por %p50, %p51
    %s54 = sadd.s32 %s53, 1
    %p57 = scmp.eq.s32.totalorder %s12, 3
    %p58 = scmp.ne.s32.totalorder %s53, %s55
    %p59 = scmp.eq.s32.totalorder %s12, 0
    %p60 = por %p58, %p59
    %p61 = scmp.ne.s32.totalorder %s53, %s55
    %p62 = scmp.eq.s32.totalorder %s17, 3
    %p63 = por %p61, %p62
    %p64 = scmp.ne.s32.totalorder %s55, %s56
    %p65 = scmp.eq.s32.totalorder %s17, 0
    %p66 = por %p64, %p65
    %p67 = scmp.ne.s32.totalorder %s55, %s56
    %p68 = scmp.eq.s32.totalorder %s18, 3
    %p69 = por %p67, %p68
    %p71 = scmp.ne.s32.totalorder %s56, %s70
    %p72 = scmp.eq.s32.totalorder %s18, 0
    %p73 = por %p71, %p72
    %s75 = sadd.s32 %s74, 1
    %p78 = scmp.eq.s32.totalorder %s12, 3
    %p79 = scmp.ne.s32.totalorder %s74, %s76
    %p80 = scmp.eq.s32.totalorder %s12, 0
    %p81 = por %p79, %p80
    %p82 = scmp.ne.s32.totalorder %s74, %s76
    %p83 = scmp.eq.s32.totalorder %s17, 3
    %p84 = por %p82, %p83
    %p85 = scmp.ne.s32.totalorder %s76, %s77
    %p86 = scmp.eq.s32.totalorder %s17, 0
    %p87 = por %p85, %p86
    %p88 = scmp.ne.s32.totalorder %s76, %s77
    %p89 = scmp.eq.s32.totalorder %s18, 3
    %p90 = por %p88, %p89
    %p92 = scmp.ne.s32.totalorder %s77, %s91
    %p93 = scmp.eq.s32.totalorder %s18, 0
    %p94 = por %p92, %p93
    %s95 = smul.u32 %s19, 2
    %s96 = sadd.s32 %s95, %s20
    %s97 = smul.u32 %s31, 2
    %s98 = sadd.s32 %s97, %s27
    %s99 = ssub.s32 %s96, %s98
    %p100 = scmp.eq.s32.totalorder %s99, 0
    %s102 = sadd.s32 %s101, 1
    %s103 = scalar_select %p100, %s101, %s102
    %p106 = pneg %p100
    %p107 = scmp.eq.s32.totalorder %s12, 3
    %p108 = por %p106, %p107
    %p109 = scmp.ne.s32.totalorder %s101, %s104
    %p110 = scmp.eq.s32.totalorder %s12, 0
    %p111 = por %p109, %p110
    %p112 = scmp.ne.s32.totalorder %s101, %s104
    %p113 = scmp.eq.s32.totalorder %s17, 3
    %p114 = por %p112, %p113
    %p115 = scmp.ne.s32.totalorder %s104, %s105
    %p116 = scmp.eq.s32.totalorder %s17, 0
    %p117 = por %p115, %p116
    %p118 = scmp.ne.s32.totalorder %s104, %s105
    %p119 = scmp.eq.s32.totalorder %s18, 3
    %p120 = por %p118, %p119
    %p122 = scmp.ne.s32.totalorder %s105, %s121
    %p123 = scmp.eq.s32.totalorder %s18, 0
    %p124 = por %p122, %p123
    %s125 = smul.u32 %s19, 2
    %s126 = sadd.s32 %s125, %s20
    %s127 = smul.u32 %s31, 2
    %s128 = sadd.s32 %s127, %s27
    %s129 = ssub.s32 %s126, %s128
    %p130 = scmp.eq.s32.totalorder %s129, 0
    %s132 = sadd.s32 %s131, 1
    %s133 = scalar_select %p130, %s131, %s132
    %p136 = pneg %p130
    %p137 = scmp.eq.s32.totalorder %s12, 3
    %p138 = por %p136, %p137
    %p139 = scmp.ne.s32.totalorder %s131, %s134
    %p140 = scmp.eq.s32.totalorder %s12, 0
    %p141 = por %p139, %p140
    %p142 = scmp.ne.s32.totalorder %s131, %s134
    %p143 = scmp.eq.s32.totalorder %s17, 3
    %p144 = por %p142, %p143
    %p145 = scmp.ne.s32.totalorder %s134, %s135
    %p146 = scmp.eq.s32.totalorder %s17, 0
    %p147 = por %p145, %p146
    %p148 = scmp.ne.s32.totalorder %s134, %s135
    %p149 = scmp.eq.s32.totalorder %s18, 3
    %p150 = por %p148, %p149
    %p152 = scmp.ne.s32.totalorder %s135, %s151
    %p153 = scmp.eq.s32.totalorder %s18, 0
    %p154 = por %p152, %p153
    %p155 = scmp.le.s32.totalorder 1, %s12
    %p156 = scmp.lt.s32.totalorder %s12, 5
    %p157 = pnand %p155, %p156
    %p158 = pneg %p157
    // Predicated region
    $region9: #{double_conv.4} parent=5 // pred_check
      _
    $region10: #{double_conv.4} parent=5 // pred_check_branch
      %160 = sbr.rel (%p157) target = $region12
    $region11: #{double_conv.4} parent=5 // pred_region
      %s161 = ssub.s32 %s12, 1
      // Predicated region
      $region13: #{double_conv.4} parent=11 // pred_check
        %p162 = pneg %p45
      $region14: #{double_conv.4} parent=11 // pred_check_branch
        %164 = sbr.rel (%p162) target = $region16
      $region15: #{double_conv.4} parent=11 // pred_region
        _
      $region16: #{double_conv.4} parent=11 // pred_fallthru
        _
      // Predicated region
      $region17: #{double_conv.4} parent=11 // pred_check
        %p165 = pneg %p66
      $region18: #{double_conv.4} parent=11 // pred_check_branch
        %167 = sbr.rel (%p165) target = $region20
      $region19: #{double_conv.4} parent=11 // pred_region
        _
      $region20: #{double_conv.4} parent=11 // pred_fallthru
        _
      // Predicated region
      $region21: #{double_conv.4} parent=11 // pred_check
        %p168 = pneg %p87
      $region22: #{double_conv.4} parent=11 // pred_check_branch
        %170 = sbr.rel (%p168) target = $region24
      $region23: #{double_conv.4} parent=11 // pred_region
        _
      $region24: #{double_conv.4} parent=11 // pred_fallthru
        _
    $region12: #{double_conv.4} parent=5 // pred_fallthru
      _
    %p171 = scmp.lt.s32.totalorder %s12, 4
    // Predicated region
    $region25: #{double_conv.4} parent=5 // pred_check
      %p172 = pneg %p171
    $region26: #{double_conv.4} parent=5 // pred_check_branch
      %174 = sbr.rel (%p172) target = $region28
    $region27: #{double_conv.4} parent=5 // pred_region
      _
    $region28: #{double_conv.4} parent=5 // pred_fallthru
      _
    %p175 = scmp.le.s32.totalorder 1, %s12
    %p176 = scmp.lt.s32.totalorder %s12, 5
    %p177 = pnand %p175, %p176
    %p178 = pneg %p177
    // Predicated region
    $region29: #{double_conv.4} parent=5 // pred_check
      _
    $region30: #{double_conv.4} parent=5 // pred_check_branch
      %180 = sbr.rel (%p177) target = $region32
    $region31: #{double_conv.4} parent=5 // pred_region
      %s181 = ssub.s32 %s12, 1
      %p182 = pneg %p45
      %p183 = pneg %p42
      %p184 = pneg %p66
      %p185 = pneg %p63
      %p186 = pneg %p87
      %p187 = pneg %p84
      %p188 = pneg %p117
      %p189 = pneg %p114
      %s190 = smul.u32 %s21, 2
      %s191 = sadd.s32 %s190, %s22
      %p192 = scmp.lt.s32.totalorder %s191, 3
      %s193 = scalar_select %p192, %s191, 3
      %s194 = smul.addr %s193, 8
      %s195 = scalar_lea.vmem %s4, %s194
      %p196 = pneg %p147
      %p197 = pneg %p144
      %s198 = smul.u32 %s21, 2
      %s199 = sadd.s32 %s198, %s22
      %p200 = scmp.lt.s32.totalorder %s199, 3
      %s201 = scalar_select %p200, %s199, 3
      %s202 = smul.addr %s201, 2
      %s203 = scalar_lea.vmem %s5, %s202
      %s204 = smul.u32 %s21, 2
      %s205 = sadd.s32 %s204, %s22
      %p206 = scmp.lt.s32.totalorder %s205, 3
      %s207 = scalar_select %p206, %s205, 3
      %s208 = smul.addr %s207, 8
      %s209 = scalar_lea.vmem %s4, %s208
      %s210 = smul.u32 %s21, 2
      %s211 = sadd.s32 %s210, %s22
      %s212 = smul.u32 %s21, 2
      %s213 = sadd.s32 %s212, %s22
      %p214 = scmp.lt.s32.totalorder %s213, 3
      %s215 = scalar_select %p214, %s213, 3
      %s216 = smul.addr %s215, 2
      %s217 = scalar_lea.vmem %s5, %s216
      %s218 = smul.u32 %s21, 2
      %s219 = sadd.s32 %s218, %s22
      %s220 = smul.u32 %s21, 16
      %s221 = smul.u32 %s22, 8
      %s222 = sadd.s32 %s220, %s221
      %s223 = ssub.s32 %s222, 1
      %p224 = scmp.gt.s32.totalorder %s223, 0
      %s225 = scalar_select %p224, %s223, 0
      %s226 = sadd.s32 %s222, 8
      %p227 = scmp.lt.s32.totalorder %s226, 31
      %s228 = scalar_select %p227, %s226, 31
      %s229 = scalar_lea.vmem %s0, %s222
      %s230 = scalar_lea.vmem [#allocation2], 1
      %p232 = scmp.lt.u32.totalorder 8, 8
      %p233 = pneg %p232
      // Predicated region
      $region33: #{double_conv.4} parent=31 // pred_check
        _
      $region34: #{double_conv.4} parent=31 // pred_check_branch
        %235 = sbr.rel (%p232) target = $region36
      $region35: #{double_conv.4} parent=31 // pred_region
        %s250 = sand.u32 8, 7
        %p251 = scmp.eq.s32.totalorder %s250, 0
        // Predicated region
        $region48: #{double_conv.4} parent=35 // pred_check
          %p252 = pneg %p251
        $region49: #{double_conv.4} parent=35 // pred_check_branch
          %254 = sbr.rel (%p252) target = $region51
        $region50: #{double_conv.4} parent=35 // pred_region
          loop: start=0, step=1, limit=1
          $region52: #{double_conv.4} parent=50 // loop_pre_header
            _
          $region53: #{double_conv.4} parent=50 // loop_header
            %s256 = sphi 0, %s260
            %p257 = scmp.ge.s32.totalorder %s256, 1
            %s261 = sphi %s229, %s229
            %s262 = sphi %s230, %s230
          $region54: #{double_conv.4} parent=50 // loop_header_branch
            %259 = sbr.rel (%p257) target = $region58
          $region55: #{double_conv.4} parent=50 // loop_body
            %v263 = vld [vmem:[%s261] sm:$0xff]
            %264 = vst [vmem:[%s262] sm:$0xff] %v263
          $region56: #{double_conv.4} parent=50 // loop_footer
            %s260 = sadd.s32 1, %s256
          $region57: #{double_conv.4} parent=50 // loop_footer_branch
            %255 = sbr.rel target = $region53
          $region58: #{double_conv.4} parent=50 // loop_exit
            _
        $region51: #{double_conv.4} parent=35 // pred_fallthru
          _
        %p265 = pneg %p251
        // Predicated region
        $region59: #{double_conv.4} parent=35 // pred_check
          _
        $region60: #{double_conv.4} parent=35 // pred_check_branch
          %267 = sbr.rel (%p251) target = $region62
        $region61: #{double_conv.4} parent=35 // pred_region
          %s268 = sand.u32 8, 7
        $region62: #{double_conv.4} parent=35 // pred_fallthru
          _
      $region36: #{double_conv.4} parent=31 // pred_fallthru
        _
      // Predicated region
      $region37: #{double_conv.4} parent=31 // pred_check
        %p236 = pneg %p232
      $region38: #{double_conv.4} parent=31 // pred_check_branch
        %238 = sbr.rel (%p236) target = $region40
      $region39: #{double_conv.4} parent=31 // pred_region
        %s239 = sshllo.u32 0, 8
        loop: start=0, step=1, limit=1
        $region41: #{double_conv.4} parent=39 // loop_pre_header
          _
        $region42: #{double_conv.4} parent=39 // loop_header
          %s241 = sphi 0, %s245
          %p242 = scmp.ge.s32.totalorder %s241, 1
          %s246 = sphi %s229, %s229
          %s247 = sphi %s230, %s230
        $region43: #{double_conv.4} parent=39 // loop_header_branch
          %244 = sbr.rel (%p242) target = $region47
        $region44: #{double_conv.4} parent=39 // loop_body
          %v248 = vld [vmem:[%s246] sm:%s239]
          %249 = vst [vmem:[%s247] sm:%s239] %v248
        $region45: #{double_conv.4} parent=39 // loop_footer
          %s245 = sadd.s32 1, %s241
        $region46: #{double_conv.4} parent=39 // loop_footer_branch
          %240 = sbr.rel target = $region42
        $region47: #{double_conv.4} parent=39 // loop_exit
          _
      $region40: #{double_conv.4} parent=31 // pred_fallthru
        _
      // Predicated region
      $region63: #{double_conv.4} parent=31 // pred_check
        _
      $region64: #{double_conv.4} parent=31 // pred_check_branch
        %271 = sbr.rel (0) target = $region66
      $region65: #{double_conv.4} parent=31 // pred_region
        %272 = vsyncadd [#allocation3], 128
      $region66: #{double_conv.4} parent=31 // pred_fallthru
        _
      %s273 = scalar_lea.vmem %s0, %s225
      %s274 = scalar_lea.sflag [#allocation3], 1
      %p276 = scmp.lt.u32.totalorder 1, 8
      %p277 = pneg %p276
      // Predicated region
      $region67: #{double_conv.4} parent=31 // pred_check
        _
      $region68: #{double_conv.4} parent=31 // pred_check_branch
        %279 = sbr.rel (%p276) target = $region70
      $region69: #{double_conv.4} parent=31 // pred_region
        %s294 = sand.u32 1, 7
        %p295 = scmp.eq.s32.totalorder %s294, 0
        %p296 = pneg %p295
        // Predicated region
        $region82: #{double_conv.4} parent=69 // pred_check
          _
        $region83: #{double_conv.4} parent=69 // pred_check_branch
          %298 = sbr.rel (%p295) target = $region85
        $region84: #{double_conv.4} parent=69 // pred_region
          %s299 = sand.u32 1, 7
          %s300 = ssub.s32 1, %s299
          %s301 = scalar_lea.vmem %s273, %s300
          %s302 = ssub.s32 1, %s299
          %s303 = scalar_lea.vmem [#allocation2], %s302
          %s304 = sshllo.u32 0, %s299
          loop: start=0, step=1, limit=1
          $region86: #{double_conv.4} parent=84 // loop_pre_header
            _
          $region87: #{double_conv.4} parent=84 // loop_header
            %s306 = sphi 0, %s310
            %p307 = scmp.ge.s32.totalorder %s306, 1
            %s311 = sphi %s301, %s301
            %s312 = sphi %s303, %s303
          $region88: #{double_conv.4} parent=84 // loop_header_branch
            %309 = sbr.rel (%p307) target = $region92
          $region89: #{double_conv.4} parent=84 // loop_body
            %v313 = vld [vmem:[%s311] sm:%s304]
            %314 = vst [vmem:[%s312] sm:%s304] %v313
          $region90: #{double_conv.4} parent=84 // loop_footer
            %s310 = sadd.s32 1, %s306
          $region91: #{double_conv.4} parent=84 // loop_footer_branch
            %305 = sbr.rel target = $region87
          $region92: #{double_conv.4} parent=84 // loop_exit
            _
        $region85: #{double_conv.4} parent=69 // pred_fallthru
          _
      $region70: #{double_conv.4} parent=31 // pred_fallthru
        _
      // Predicated region
      $region71: #{double_conv.4} parent=31 // pred_check
        %p280 = pneg %p276
      $region72: #{double_conv.4} parent=31 // pred_check_branch
        %282 = sbr.rel (%p280) target = $region74
      $region73: #{double_conv.4} parent=31 // pred_region
        %s283 = sshllo.u32 0, 1
        loop: start=0, step=1, limit=1
        $region75: #{double_conv.4} parent=73 // loop_pre_header
          _
        $region76: #{double_conv.4} parent=73 // loop_header
          %s285 = sphi 0, %s289
          %p286 = scmp.ge.s32.totalorder %s285, 1
          %s290 = sphi %s273, %s273
          %s291 = sphi [#allocation2], [#allocation2]
        $region77: #{double_conv.4} parent=73 // loop_header_branch
          %288 = sbr.rel (%p286) target = $region81
        $region78: #{double_conv.4} parent=73 // loop_body
          %v292 = vld [vmem:[%s290] sm:%s283]
          %293 = vst [vmem:[%s291] sm:%s283] %v292
        $region79: #{double_conv.4} parent=73 // loop_footer
          %s289 = sadd.s32 1, %s285
        $region80: #{double_conv.4} parent=73 // loop_footer_branch
          %284 = sbr.rel target = $region76
        $region81: #{double_conv.4} parent=73 // loop_exit
          _
      $region74: #{double_conv.4} parent=31 // pred_fallthru
        _
      // Predicated region
      $region93: #{double_conv.4} parent=31 // pred_check
        _
      $region94: #{double_conv.4} parent=31 // pred_check_branch
        %317 = sbr.rel (0) target = $region96
      $region95: #{double_conv.4} parent=31 // pred_region
        %318 = vsyncadd %s274, 16
      $region96: #{double_conv.4} parent=31 // pred_fallthru
        _
      %s319 = scalar_lea.vmem %s0, %s228
      %s320 = scalar_lea.vmem [#allocation2], 9
      %s321 = scalar_lea.sflag [#allocation3], 2
      %p323 = scmp.lt.u32.totalorder 1, 8
      %p324 = pneg %p323
      // Predicated region
      $region97: #{double_conv.4} parent=31 // pred_check
        _
      $region98: #{double_conv.4} parent=31 // pred_check_branch
        %326 = sbr.rel (%p323) target = $region100
      $region99: #{double_conv.4} parent=31 // pred_region
        %s341 = sand.u32 1, 7
        %p342 = scmp.eq.s32.totalorder %s341, 0
        %p343 = pneg %p342
        // Predicated region
        $region112: #{double_conv.4} parent=99 // pred_check
          _
        $region113: #{double_conv.4} parent=99 // pred_check_branch
          %345 = sbr.rel (%p342) target = $region115
        $region114: #{double_conv.4} parent=99 // pred_region
          %s346 = sand.u32 1, 7
          %s347 = ssub.s32 1, %s346
          %s348 = scalar_lea.vmem %s319, %s347
          %s349 = ssub.s32 1, %s346
          %s350 = scalar_lea.vmem %s320, %s349 [#allocation2]
          %s351 = sshllo.u32 0, %s346
          loop: start=0, step=1, limit=1
          $region116: #{double_conv.4} parent=114 // loop_pre_header
            _
          $region117: #{double_conv.4} parent=114 // loop_header
            %s353 = sphi 0, %s357
            %p354 = scmp.ge.s32.totalorder %s353, 1
            %s358 = sphi %s348, %s348
            %s359 = sphi %s350, %s350
          $region118: #{double_conv.4} parent=114 // loop_header_branch
            %356 = sbr.rel (%p354) target = $region122
          $region119: #{double_conv.4} parent=114 // loop_body
            %v360 = vld [vmem:[%s358] sm:%s351]
            %361 = vst [vmem:[%s359] sm:%s351] %v360
          $region120: #{double_conv.4} parent=114 // loop_footer
            %s357 = sadd.s32 1, %s353
          $region121: #{double_conv.4} parent=114 // loop_footer_branch
            %352 = sbr.rel target = $region117
          $region122: #{double_conv.4} parent=114 // loop_exit
            _
        $region115: #{double_conv.4} parent=99 // pred_fallthru
          _
      $region100: #{double_conv.4} parent=31 // pred_fallthru
        _
      // Predicated region
      $region101: #{double_conv.4} parent=31 // pred_check
        %p327 = pneg %p323
      $region102: #{double_conv.4} parent=31 // pred_check_branch
        %329 = sbr.rel (%p327) target = $region104
      $region103: #{double_conv.4} parent=31 // pred_region
        %s330 = sshllo.u32 0, 1
        loop: start=0, step=1, limit=1
        $region105: #{double_conv.4} parent=103 // loop_pre_header
          _
        $region106: #{double_conv.4} parent=103 // loop_header
          %s332 = sphi 0, %s336
          %p333 = scmp.ge.s32.totalorder %s332, 1
          %s337 = sphi %s319, %s319
          %s338 = sphi %s320, %s320
        $region107: #{double_conv.4} parent=103 // loop_header_branch
          %335 = sbr.rel (%p333) target = $region111
        $region108: #{double_conv.4} parent=103 // loop_body
          %v339 = vld [vmem:[%s337] sm:%s330]
          %340 = vst [vmem:[%s338] sm:%s330] %v339
        $region109: #{double_conv.4} parent=103 // loop_footer
          %s336 = sadd.s32 1, %s332
        $region110: #{double_conv.4} parent=103 // loop_footer_branch
          %331 = sbr.rel target = $region106
        $region111: #{double_conv.4} parent=103 // loop_exit
          _
      $region104: #{double_conv.4} parent=31 // pred_fallthru
        _
      // Predicated region
      $region123: #{double_conv.4} parent=31 // pred_check
        _
      $region124: #{double_conv.4} parent=31 // pred_check_branch
        %364 = sbr.rel (0) target = $region126
      $region125: #{double_conv.4} parent=31 // pred_region
        %365 = vsyncadd %s321, 16
      $region126: #{double_conv.4} parent=31 // pred_fallthru
        _
      %s366 = smul.u32 8, 1
      %s367 = sshll.u32 %s366, 4
      %368 = dma.done [#allocation3], %s367
      %s369 = smul.u32 1, 1
      %s370 = sshll.u32 %s369, 4
      %371 = dma.done %s274, %s370
      %s372 = sshll.u32 %s369, 4
      %373 = dma.done %s321, %s372
      %v374 = vld [vmem:[#allocation2] sm:$0xff]
      %v375 = vld [vmem:[#allocation2 + $0x8] sm:$0x3]
      %v376 = vld [vmem:[%s1] sm:$0x1]
      %v378 = vlaneseq
      %v379 = vshrl.u32 %v378, 7
      %v380 = vsub.s32 0, %v379
      %v381 = vrot.slane %v376, %v380
      %v383 = vmul.f32 %v374, %v381
      %v384 = vmul.f32 %v375, %v381
      %v385 = vld [vmem:[%s2] sm:$0x1]
      %v387 = vlaneseq
      %v388 = vshrl.u32 %v387, 7
      %v389 = vsub.s32 0, %v388
      %v390 = vrot.slane %v385, %v389
      %v392 = vadd.f32 %v383, %v390
      %v393 = vadd.f32 %v384, %v390
      %v394 = vmax.f32 %v392, 0.0
      %v395 = vmax.f32 %v393, 0.0
      %396 = vst [vmem:[#allocation2] sm:$0xff] %v394
      %397 = vst [vmem:[#allocation2 + $0x8] sm:$0x3] %v395
      %p398 = scmp.eq.s32.totalorder %s22, 0
      // Predicated region
      $region127: #{double_conv.4} parent=31 // pred_check
        %p399 = pneg %p398
      $region128: #{double_conv.4} parent=31 // pred_check_branch
        %401 = sbr.rel (%p399) target = $region130
      $region129: #{double_conv.4} parent=31 // pred_region
        %402 = vst [vmem:[#allocation2] sm:$0x1] 0.0
      $region130: #{double_conv.4} parent=31 // pred_fallthru
        _
      %p403 = scmp.eq.s32.totalorder %s22, 1
      // Predicated region
      $region131: #{double_conv.4} parent=31 // pred_check
        %p404 = pneg %p403
      $region132: #{double_conv.4} parent=31 // pred_check_branch
        %406 = sbr.rel (%p404) target = $region134
      $region133: #{double_conv.4} parent=31 // pred_region
        %407 = vst [vmem:[#allocation2 + $0x9] sm:$0x1] 0.0
      $region134: #{double_conv.4} parent=31 // pred_fallthru
        _
      %v408 = vld [vmem:[#allocation2] sm:$0xff]
      %v409 = vld [vmem:[%s3] sm:$0xff]
      %v410 = vld [vmem:[%s3 + $0x8] sm:$0xff]
      %v411 = vld [vmem:[%s3 + $0x10] sm:$0xff]
      %v412 = vld [vmem:[%s3 + $0x18] sm:$0xff]
      %v413 = vld [vmem:[%s3 + $0x20] sm:$0xff]
      %v414 = vld [vmem:[%s3 + $0x28] sm:$0xff]
      %v415 = vld [vmem:[%s3 + $0x30] sm:$0xff]
      %v416 = vld [vmem:[%s3 + $0x38] sm:$0xff]
      %v417 = vld [vmem:[%s3 + $0x40] sm:$0xff]
      %v418 = vld [vmem:[%s3 + $0x48] sm:$0xff]
      %v419 = vld [vmem:[%s3 + $0x50] sm:$0xff]
      %v420 = vld [vmem:[%s3 + $0x58] sm:$0xff]
      %v421 = vld [vmem:[%s3 + $0x60] sm:$0xff]
      %v422 = vld [vmem:[%s3 + $0x68] sm:$0xff]
      %v423 = vld [vmem:[%s3 + $0x70] sm:$0xff]
      %v424 = vld [vmem:[%s3 + $0x78] sm:$0xff]
      %v425 = vld [vmem:[#allocation2 + $0x1] sm:$0xff]
      %s426 = scalar_lea.vmem %s3, 128
      %v427 = vld [vmem:[%s426] sm:$0xff]
      %v428 = vld [vmem:[%s426 + $0x8] sm:$0xff]
      %v429 = vld [vmem:[%s426 + $0x10] sm:$0xff]
      %v430 = vld [vmem:[%s426 + $0x18] sm:$0xff]
      %v431 = vld [vmem:[%s426 + $0x20] sm:$0xff]
      %v432 = vld [vmem:[%s426 + $0x28] sm:$0xff]
      %v433 = vld [vmem:[%s426 + $0x30] sm:$0xff]
      %v434 = vld [vmem:[%s426 + $0x38] sm:$0xff]
      %v435 = vld [vmem:[%s426 + $0x40] sm:$0xff]
      %v436 = vld [vmem:[%s426 + $0x48] sm:$0xff]
      %v437 = vld [vmem:[%s426 + $0x50] sm:$0xff]
      %v438 = vld [vmem:[%s426 + $0x58] sm:$0xff]
      %v439 = vld [vmem:[%s426 + $0x60] sm:$0xff]
      %v440 = vld [vmem:[%s426 + $0x68] sm:$0xff]
      %v441 = vld [vmem:[%s426 + $0x70] sm:$0xff]
      %v442 = vld [vmem:[%s426 + $0x78] sm:$0xff]
      %443 = vmatprep.subr.mxu0 0.0
      %444 = vmatpush1.msra.mxu0 %v427
      %445 = vmatprep.subr.mxu0 0.0
      %446 = vmatpush1.msra.mxu0 %v428
      %447 = vmatprep.subr.mxu0 0.0
      %448 = vmatpush1.msra.mxu0 %v429
      %449 = vmatprep.subr.mxu0 0.0
      %450 = vmatpush1.msra.mxu0 %v430
      %451 = vmatprep.subr.mxu0 0.0
      %452 = vmatpush1.msra.mxu0 %v431
      %453 = vmatprep.subr.mxu0 0.0
      %454 = vmatpush1.msra.mxu0 %v432
      %455 = vmatprep.subr.mxu0 0.0
      %456 = vmatpush1.msra.mxu0 %v433
      %457 = vmatprep.subr.mxu0 0.0
      %458 = vmatpush1.msra.mxu0 %v434
      %459 = vmatprep.subr.mxu0 0.0
      %460 = vmatpush1.msra.mxu0 %v435
      %461 = vmatprep.subr.mxu0 0.0
      %462 = vmatpush1.msra.mxu0 %v436
      %463 = vmatprep.subr.mxu0 0.0
      %464 = vmatpush1.msra.mxu0 %v437
      %465 = vmatprep.subr.mxu0 0.0
      %466 = vmatpush1.msra.mxu0 %v438
      %467 = vmatprep.subr.mxu0 0.0
      %468 = vmatpush1.msra.mxu0 %v439
      %469 = vmatprep.subr.mxu0 0.0
      %470 = vmatpush1.msra.mxu0 %v440
      %471 = vmatprep.subr.mxu0 0.0
      %472 = vmatpush1.msra.mxu0 %v441
      %473 = vmatprep.subr.mxu0 0.0
      %474 = vmatpush1.msra.mxu0 %v442
      %475 = vmatprep.subr.mxu0 0.0
      %476 = vmatpush1.msra.mxu0 0.0
      %477 = vmatprep.subr.mxu0 0.0
      %478 = vmatpush1.msra.mxu0 0.0
      %479 = vmatprep.subr.mxu0 0.0
      %480 = vmatpush1.msra.mxu0 0.0
      %481 = vmatprep.subr.mxu0 0.0
      %482 = vmatpush1.msra.mxu0 0.0
      %483 = vmatprep.subr.mxu0 0.0
      %484 = vmatpush1.msra.mxu0 0.0
      %485 = vmatprep.subr.mxu0 0.0
      %486 = vmatpush1.msra.mxu0 0.0
      %487 = vmatprep.subr.mxu0 0.0
      %488 = vmatpush1.msra.mxu0 0.0
      %489 = vmatprep.subr.mxu0 0.0
      %490 = vmatpush1.msra.mxu0 0.0
      %491 = vmatprep.subr.mxu0 0.0
      %492 = vmatpush1.msra.mxu0 0.0
      %493 = vmatprep.subr.mxu0 0.0
      %494 = vmatpush1.msra.mxu0 0.0
      %495 = vmatprep.subr.mxu0 0.0
      %496 = vmatpush1.msra.mxu0 0.0
      %497 = vmatprep.subr.mxu0 0.0
      %498 = vmatpush1.msra.mxu0 0.0
      %499 = vmatprep.subr.mxu0 0.0
      %500 = vmatpush1.msra.mxu0 0.0
      %501 = vmatprep.subr.mxu0 0.0
      %502 = vmatpush1.msra.mxu0 0.0
      %503 = vmatprep.subr.mxu0 0.0
      %504 = vmatpush1.msra.mxu0 0.0
      %505 = vmatprep.subr.mxu0 0.0
      %506 = vmatpush1.msra.mxu0 0.0
      %507 = vmatprep.mubr.f32.mxu0 0.0
      %508 = vmatmul.mubr.f32.gmra.mrb[0].mxu0 %v425
      %v509 = vpop.f32.mrb[0].mxu0
      %v510 = vadd.f32 0.0, %v509
      %v511 = vpop.f32.mrb[0].mxu0
      %512 = vdwg.mxu0
      %513 = vmatprep.subr.mxu0 0.0
      %514 = vmatpush1.msra.mxu0 %v409
      %515 = vmatprep.subr.mxu0 0.0
      %516 = vmatpush1.msra.mxu0 %v410
      %517 = vmatprep.subr.mxu0 0.0
      %518 = vmatpush1.msra.mxu0 %v411
      %519 = vmatprep.subr.mxu0 0.0
      %520 = vmatpush1.msra.mxu0 %v412
      %521 = vmatprep.subr.mxu0 0.0
      %522 = vmatpush1.msra.mxu0 %v413
      %523 = vmatprep.subr.mxu0 0.0
      %524 = vmatpush1.msra.mxu0 %v414
      %525 = vmatprep.subr.mxu0 0.0
      %526 = vmatpush1.msra.mxu0 %v415
      %527 = vmatprep.subr.mxu0 0.0
      %528 = vmatpush1.msra.mxu0 %v416
      %529 = vmatprep.subr.mxu0 0.0
      %530 = vmatpush1.msra.mxu0 %v417
      %531 = vmatprep.subr.mxu0 0.0
      %532 = vmatpush1.msra.mxu0 %v418
      %533 = vmatprep.subr.mxu0 0.0
      %534 = vmatpush1.msra.mxu0 %v419
      %535 = vmatprep.subr.mxu0 0.0
      %536 = vmatpush1.msra.mxu0 %v420
      %537 = vmatprep.subr.mxu0 0.0
      %538 = vmatpush1.msra.mxu0 %v421
      %539 = vmatprep.subr.mxu0 0.0
      %540 = vmatpush1.msra.mxu0 %v422
      %541 = vmatprep.subr.mxu0 0.0
      %542 = vmatpush1.msra.mxu0 %v423
      %543 = vmatprep.subr.mxu0 0.0
      %544 = vmatpush1.msra.mxu0 %v424
      %545 = vmatprep.subr.mxu0 0.0
      %546 = vmatpush1.msra.mxu0 0.0
      %547 = vmatprep.subr.mxu0 0.0
      %548 = vmatpush1.msra.mxu0 0.0
      %549 = vmatprep.subr.mxu0 0.0
      %550 = vmatpush1.msra.mxu0 0.0
      %551 = vmatprep.subr.mxu0 0.0
      %552 = vmatpush1.msra.mxu0 0.0
      %553 = vmatprep.subr.mxu0 0.0
      %554 = vmatpush1.msra.mxu0 0.0
      %555 = vmatprep.subr.mxu0 0.0
      %556 = vmatpush1.msra.mxu0 0.0
      %557 = vmatprep.subr.mxu0 0.0
      %558 = vmatpush1.msra.mxu0 0.0
      %559 = vmatprep.subr.mxu0 0.0
      %560 = vmatpush1.msra.mxu0 0.0
      %561 = vmatprep.subr.mxu0 0.0
      %562 = vmatpush1.msra.mxu0 0.0
      %563 = vmatprep.subr.mxu0 0.0
      %564 = vmatpush1.msra.mxu0 0.0
      %565 = vmatprep.subr.mxu0 0.0
      %566 = vmatpush1.msra.mxu0 0.0
      %567 = vmatprep.subr.mxu0 0.0
      %568 = vmatpush1.msra.mxu0 0.0
      %569 = vmatprep.subr.mxu0 0.0
      %570 = vmatpush1.msra.mxu0 0.0
      %571 = vmatprep.subr.mxu0 0.0
      %572 = vmatpush1.msra.mxu0 0.0
      %573 = vmatprep.subr.mxu0 0.0
      %574 = vmatpush1.msra.mxu0 0.0
      %575 = vmatprep.subr.mxu0 0.0
      %576 = vmatpush1.msra.mxu0 0.0
      %577 = vmatprep.mubr.f32.mxu0 0.0
      %578 = vmatmul.mubr.f32.gmra.mrb[0].mxu0 %v408
      %v579 = vpop.f32.mrb[0].mxu0
      %v580 = vadd.f32 %v510, %v579
      %v581 = vpop.f32.mrb[0].mxu0
      %582 = vdwg.mxu0
      %v583 = vld [vmem:[#allocation2 + $0x2] sm:$0xff]
      %s584 = scalar_lea.vmem %s3, 256
      %v585 = vld [vmem:[%s584] sm:$0xff]
      %v586 = vld [vmem:[%s584 + $0x8] sm:$0xff]
      %v587 = vld [vmem:[%s584 + $0x10] sm:$0xff]
      %v588 = vld [vmem:[%s584 + $0x18] sm:$0xff]
      %v589 = vld [vmem:[%s584 + $0x20] sm:$0xff]
      %v590 = vld [vmem:[%s584 + $0x28] sm:$0xff]
      %v591 = vld [vmem:[%s584 + $0x30] sm:$0xff]
      %v592 = vld [vmem:[%s584 + $0x38] sm:$0xff]
      %v593 = vld [vmem:[%s584 + $0x40] sm:$0xff]
      %v594 = vld [vmem:[%s584 + $0x48] sm:$0xff]
      %v595 = vld [vmem:[%s584 + $0x50] sm:$0xff]
      %v596 = vld [vmem:[%s584 + $0x58] sm:$0xff]
      %v597 = vld [vmem:[%s584 + $0x60] sm:$0xff]
      %v598 = vld [vmem:[%s584 + $0x68] sm:$0xff]
      %v599 = vld [vmem:[%s584 + $0x70] sm:$0xff]
      %v600 = vld [vmem:[%s584 + $0x78] sm:$0xff]
      %601 = vmatprep.subr.mxu0 0.0
      %602 = vmatpush1.msra.mxu0 %v585
      %603 = vmatprep.subr.mxu0 0.0
      %604 = vmatpush1.msra.mxu0 %v586
      %605 = vmatprep.subr.mxu0 0.0
      %606 = vmatpush1.msra.mxu0 %v587
      %607 = vmatprep.subr.mxu0 0.0
      %608 = vmatpush1.msra.mxu0 %v588
      %609 = vmatprep.subr.mxu0 0.0
      %610 = vmatpush1.msra.mxu0 %v589
      %611 = vmatprep.subr.mxu0 0.0
      %612 = vmatpush1.msra.mxu0 %v590
      %613 = vmatprep.subr.mxu0 0.0
      %614 = vmatpush1.msra.mxu0 %v591
      %615 = vmatprep.subr.mxu0 0.0
      %616 = vmatpush1.msra.mxu0 %v592
      %617 = vmatprep.subr.mxu0 0.0
      %618 = vmatpush1.msra.mxu0 %v593
      %619 = vmatprep.subr.mxu0 0.0
      %620 = vmatpush1.msra.mxu0 %v594
      %621 = vmatprep.subr.mxu0 0.0
      %622 = vmatpush1.msra.mxu0 %v595
      %623 = vmatprep.subr.mxu0 0.0
      %624 = vmatpush1.msra.mxu0 %v596
      %625 = vmatprep.subr.mxu0 0.0
      %626 = vmatpush1.msra.mxu0 %v597
      %627 = vmatprep.subr.mxu0 0.0
      %628 = vmatpush1.msra.mxu0 %v598
      %629 = vmatprep.subr.mxu0 0.0
      %630 = vmatpush1.msra.mxu0 %v599
      %631 = vmatprep.subr.mxu0 0.0
      %632 = vmatpush1.msra.mxu0 %v600
      %633 = vmatprep.subr.mxu0 0.0
      %634 = vmatpush1.msra.mxu0 0.0
      %635 = vmatprep.subr.mxu0 0.0
      %636 = vmatpush1.msra.mxu0 0.0
      %637 = vmatprep.subr.mxu0 0.0
      %638 = vmatpush1.msra.mxu0 0.0
      %639 = vmatprep.subr.mxu0 0.0
      %640 = vmatpush1.msra.mxu0 0.0
      %641 = vmatprep.subr.mxu0 0.0
      %642 = vmatpush1.msra.mxu0 0.0
      %643 = vmatprep.subr.mxu0 0.0
      %644 = vmatpush1.msra.mxu0 0.0
      %645 = vmatprep.subr.mxu0 0.0
      %646 = vmatpush1.msra.mxu0 0.0
      %647 = vmatprep.subr.mxu0 0.0
      %648 = vmatpush1.msra.mxu0 0.0
      %649 = vmatprep.subr.mxu0 0.0
      %650 = vmatpush1.msra.mxu0 0.0
      %651 = vmatprep.subr.mxu0 0.0
      %652 = vmatpush1.msra.mxu0 0.0
      %653 = vmatprep.subr.mxu0 0.0
      %654 = vmatpush1.msra.mxu0 0.0
      %655 = vmatprep.subr.mxu0 0.0
      %656 = vmatpush1.msra.mxu0 0.0
      %657 = vmatprep.subr.mxu0 0.0
      %658 = vmatpush1.msra.mxu0 0.0
      %659 = vmatprep.subr.mxu0 0.0
      %660 = vmatpush1.msra.mxu0 0.0
      %661 = vmatprep.subr.mxu0 0.0
      %662 = vmatpush1.msra.mxu0 0.0
      %663 = vmatprep.subr.mxu0 0.0
      %664 = vmatpush1.msra.mxu0 0.0
      %665 = vmatprep.mubr.f32.mxu0 0.0
      %666 = vmatmul.mubr.f32.gmra.mrb[0].mxu0 %v583
      %v667 = vpop.f32.mrb[0].mxu0
      %v668 = vadd.f32 0.0, %v667
      %v669 = vpop.f32.mrb[0].mxu0
      %670 = vdwg.mxu0
      %v671 = vadd.f32 %v580, %v668
      %672 = vst [vmem:[%s209] sm:$0xff] %v671
      %v673 = vrot.slane %v671, 4
      %v674 = vadd.f32 %v671, %v673
      %v675 = vrot.slane %v674, 2
      %v676 = vadd.f32 %v674, %v675
      %v677 = vrot.slane %v676, 1
      %v678 = vadd.f32 %v676, %v677
      %679 = vst [vmem:[%s217] sm:$0x1] %v678
      %v680 = vmul.f32 %v671, %v671
      %v681 = vrot.slane %v680, 4
      %v682 = vadd.f32 %v680, %v681
      %v683 = vrot.slane %v682, 2
      %v684 = vadd.f32 %v682, %v683
      %v685 = vrot.slane %v684, 1
      %v686 = vadd.f32 %v684, %v685
      %687 = vst [vmem:[%s217 + $0x1] sm:$0x1] %v686
      %s688 = smul.u32 %s21, 2
      %s689 = sadd.s32 %s688, %s22
      %p690 = scmp.lt.s32.totalorder %s689, 3
      %s691 = scalar_select %p690, %s689, 3
      %s692 = smul.addr %s691, 8
      %s693 = scalar_lea.vmem %s4, %s692
      %s694 = smul.u32 %s21, 2
      %s695 = sadd.s32 %s694, %s22
      %p696 = scmp.lt.s32.totalorder %s695, 3
      %s697 = scalar_select %p696, %s695, 3
      %s698 = smul.addr %s697, 2
      %s699 = scalar_lea.vmem %s5, %s698
      // Predicated region
      $region135: #{double_conv.4} parent=31 // pred_check
        %p700 = pneg %p114
      $region136: #{double_conv.4} parent=31 // pred_check_branch
        %702 = sbr.rel (%p700) target = $region138
      $region137: #{double_conv.4} parent=31 // pred_region
        %s703 = smul.u32 %s21, 2
        %s704 = sadd.s32 %s703, %s22
      $region138: #{double_conv.4} parent=31 // pred_fallthru
        _
      // Predicated region
      $region139: #{double_conv.4} parent=31 // pred_check
        %p705 = pneg %p144
      $region140: #{double_conv.4} parent=31 // pred_check_branch
        %707 = sbr.rel (%p705) target = $region142
      $region141: #{double_conv.4} parent=31 // pred_region
        %s708 = smul.u32 %s21, 2
        %s709 = sadd.s32 %s708, %s22
      $region142: #{double_conv.4} parent=31 // pred_fallthru
        _
    $region32: #{double_conv.4} parent=5 // pred_fallthru
      _
    %p710 = scmp.le.s32.totalorder 2, %s12
    // Predicated region
    $region143: #{double_conv.4} parent=5 // pred_check
      %p711 = pneg %p710
    $region144: #{double_conv.4} parent=5 // pred_check_branch
      %713 = sbr.rel (%p711) target = $region146
    $region145: #{double_conv.4} parent=5 // pred_region
      %s714 = ssub.s32 %s12, 2
      // Predicated region
      $region147: #{double_conv.4} parent=145 // pred_check
        %p715 = pneg %p120
      $region148: #{double_conv.4} parent=145 // pred_check_branch
        %717 = sbr.rel (%p715) target = $region150
      $region149: #{double_conv.4} parent=145 // pred_region
        %s718 = smul.u32 %s23, 2
        %s719 = sadd.s32 %s718, %s24
        %p720 = scmp.lt.s32.totalorder %s719, 3
        %s721 = scalar_select %p720, %s719, 3
        %s722 = smul.addr %s721, 8
        %s723 = scalar_lea.vmem %s4, %s722
      $region150: #{double_conv.4} parent=145 // pred_fallthru
        _
      // Predicated region
      $region151: #{double_conv.4} parent=145 // pred_check
        %p724 = pneg %p150
      $region152: #{double_conv.4} parent=145 // pred_check_branch
        %726 = sbr.rel (%p724) target = $region154
      $region153: #{double_conv.4} parent=145 // pred_region
        %s727 = smul.u32 %s23, 2
        %s728 = sadd.s32 %s727, %s24
        %p729 = scmp.lt.s32.totalorder %s728, 3
        %s730 = scalar_select %p729, %s728, 3
        %s731 = smul.addr %s730, 2
        %s732 = scalar_lea.vmem %s5, %s731
      $region154: #{double_conv.4} parent=145 // pred_fallthru
        _
    $region146: #{double_conv.4} parent=5 // pred_fallthru
      _
  $region6: #{double_conv.4} parent=0 // loop_footer
    %s16 = sadd.s32 1, %s12
  $region7: #{double_conv.4} parent=0 // loop_footer_branch
    %11 = sbr.rel target = $region3
  $region8: #{double_conv.4} parent=0 // loop_exit
    _
  %733 = vsyncmov [#allocation3]
  %s734 = vpop.sfrf %733
  %p735 = scmp.eq.s32.totalorder %s734, 0
  %p736 = pneg %p735
  %738 = shalt.err (%p736)
  %s739 = scalar_lea.sflag [#allocation3], 1
  %740 = vsyncmov %s739
  %s741 = vpop.sfrf %740
  %p742 = scmp.eq.s32.totalorder %s741, 0
  %p743 = pneg %p742
  %745 = shalt.err (%p743)
  %s746 = scalar_lea.sflag [#allocation3], 2
  %747 = vsyncmov %s746
  %s748 = vpop.sfrf %747
  %p749 = scmp.eq.s32.totalorder %s748, 0
  %p750 = pneg %p749
  %752 = shalt.err (%p750)

// kernel: double_conv.5
$region0: #{double_conv.5}
  #allocation0 [shape = 'u32[]', space=smem, size = 0x4, offset = 0x4, fixed_abs, tag = 'smem constant byte address 0x4 - core index']
  #allocation1 [shape = 'u32[144,128]{1,0:T(1,128)}', space=vmem, size = 0x12000, scoped, tag = 'internal scratch']
  %s0 = inlined_call_operand.vmem [shape: f32[32,128], index: 0, kind: input, shape index: {}]
  %s1 = inlined_call_operand.vmem [shape: f32[1,128], index: 1, kind: input, shape index: {}]
  %s2 = inlined_call_operand.vmem [shape: f32[1,128], index: 2, kind: input, shape index: {}]
  %s3 = inlined_call_operand.vmem [shape: f32[32,128], index: 3, kind: output, shape index: {}]
  %s4 = sld [smem:[#allocation0]]
  $region45: #{double_conv.5} parent=0
    _
  %s6 = ssub.s32 1, %s4
  %s7 = scalar_select 0, %s6, %s4
  loop: start=0, step=1, limit=6
  $region2: #{double_conv.5} parent=0 // loop_pre_header
    _
  $region3: #{double_conv.5} parent=0 // loop_header
    %s9 = sphi 0, %s13
    %p10 = scmp.ge.s32.totalorder %s9, 6
    %s19 = sphi 0, %s21
    %s22 = sphi 0, %s19
    %s23 = sphi 0, %s22
    %s39 = sphi 0, %s23
    %s43 = sphi 0, %s43
    %s45 = sphi 0, %s43
    %s46 = sphi 0, %s45
    %s60 = sphi 0, %s46
    %s64 = sphi 0, %s64
    %s66 = sphi 0, %s64
    %s67 = sphi 0, %s66
    %s81 = sphi 0, %s67
    %s87 = sphi 0, %s89
    %s90 = sphi 0, %s87
    %s91 = sphi 0, %s90
    %s107 = sphi 0, %s91
  $region4: #{double_conv.5} parent=0 // loop_header_branch
    %12 = sbr.rel (%p10) target = $region8
  $region5: #{double_conv.5} parent=0 // loop_body
    %s14 = ssub.s32 %s9, 1
    %s15 = ssub.s32 %s9, 2
    %s16 = sadd.s32 %s9, 1
    %s17 = ssub.s32 %s9, %s16
    %p18 = scmp.eq.s32.totalorder %s17, 0
    %s20 = sadd.s32 %s19, 1
    %s21 = scalar_select %p18, %s19, %s20
    %p24 = pneg %p18
    %p25 = scmp.eq.s32.totalorder %s9, 3
    %p26 = por %p24, %p25
    %p27 = scmp.ne.s32.totalorder %s19, %s22
    %p28 = scmp.eq.s32.totalorder %s9, 0
    %p29 = por %p27, %p28
    %p30 = scmp.ne.s32.totalorder %s19, %s22
    %p31 = scmp.eq.s32.totalorder %s14, 3
    %p32 = por %p30, %p31
    %p33 = scmp.ne.s32.totalorder %s22, %s23
    %p34 = scmp.eq.s32.totalorder %s14, 0
    %p35 = por %p33, %p34
    %p36 = scmp.ne.s32.totalorder %s22, %s23
    %p37 = scmp.eq.s32.totalorder %s15, 3
    %p38 = por %p36, %p37
    %p40 = scmp.ne.s32.totalorder %s23, %s39
    %p41 = scmp.eq.s32.totalorder %s15, 0
    %p42 = por %p40, %p41
    %s44 = sadd.s32 %s43, 1
    %p47 = scmp.eq.s32.totalorder %s9, 3
    %p48 = scmp.ne.s32.totalorder %s43, %s45
    %p49 = scmp.eq.s32.totalorder %s9, 0
    %p50 = por %p48, %p49
    %p51 = scmp.ne.s32.totalorder %s43, %s45
    %p52 = scmp.eq.s32.totalorder %s14, 3
    %p53 = por %p51, %p52
    %p54 = scmp.ne.s32.totalorder %s45, %s46
    %p55 = scmp.eq.s32.totalorder %s14, 0
    %p56 = por %p54, %p55
    %p57 = scmp.ne.s32.totalorder %s45, %s46
    %p58 = scmp.eq.s32.totalorder %s15, 3
    %p59 = por %p57, %p58
    %p61 = scmp.ne.s32.totalorder %s46, %s60
    %p62 = scmp.eq.s32.totalorder %s15, 0
    %p63 = por %p61, %p62
    %s65 = sadd.s32 %s64, 1
    %p68 = scmp.eq.s32.totalorder %s9, 3
    %p69 = scmp.ne.s32.totalorder %s64, %s66
    %p70 = scmp.eq.s32.totalorder %s9, 0
    %p71 = por %p69, %p70
    %p72 = scmp.ne.s32.totalorder %s64, %s66
    %p73 = scmp.eq.s32.totalorder %s14, 3
    %p74 = por %p72, %p73
    %p75 = scmp.ne.s32.totalorder %s66, %s67
    %p76 = scmp.eq.s32.totalorder %s14, 0
    %p77 = por %p75, %p76
    %p78 = scmp.ne.s32.totalorder %s66, %s67
    %p79 = scmp.eq.s32.totalorder %s15, 3
    %p80 = por %p78, %p79
    %p82 = scmp.ne.s32.totalorder %s67, %s81
    %p83 = scmp.eq.s32.totalorder %s15, 0
    %p84 = por %p82, %p83
    %s85 = ssub.s32 %s9, %s16
    %p86 = scmp.eq.s32.totalorder %s85, 0
    %s88 = sadd.s32 %s87, 1
    %s89 = scalar_select %p86, %s87, %s88
    %p92 = pneg %p86
    %p93 = scmp.eq.s32.totalorder %s9, 3
    %p94 = por %p92, %p93
    %p95 = scmp.ne.s32.totalorder %s87, %s90
    %p96 = scmp.eq.s32.totalorder %s9, 0
    %p97 = por %p95, %p96
    %p98 = scmp.ne.s32.totalorder %s87, %s90
    %p99 = scmp.eq.s32.totalorder %s14, 3
    %p100 = por %p98, %p99
    %p101 = scmp.ne.s32.totalorder %s90, %s91
    %p102 = scmp.eq.s32.totalorder %s14, 0
    %p103 = por %p101, %p102
    %p104 = scmp.ne.s32.totalorder %s90, %s91
    %p105 = scmp.eq.s32.totalorder %s15, 3
    %p106 = por %p104, %p105
    %p108 = scmp.ne.s32.totalorder %s91, %s107
    %p109 = scmp.eq.s32.totalorder %s15, 0
    %p110 = por %p108, %p109
    %p111 = scmp.le.s32.totalorder 1, %s9
    %p112 = scmp.lt.s32.totalorder %s9, 5
    %p113 = pnand %p111, %p112
    %p114 = pneg %p113
    // Predicated region
    $region9: #{double_conv.5} parent=5 // pred_check
      _
    $region10: #{double_conv.5} parent=5 // pred_check_branch
      %116 = sbr.rel (%p113) target = $region12
    $region11: #{double_conv.5} parent=5 // pred_region
      %s117 = ssub.s32 %s9, 1
      // Predicated region
      $region13: #{double_conv.5} parent=11 // pred_check
        %p118 = pneg %p56
      $region14: #{double_conv.5} parent=11 // pred_check_branch
        %120 = sbr.rel (%p118) target = $region16
      $region15: #{double_conv.5} parent=11 // pred_region
        _
      $region16: #{double_conv.5} parent=11 // pred_fallthru
        _
      // Predicated region
      $region17: #{double_conv.5} parent=11 // pred_check
        %p121 = pneg %p77
      $region18: #{double_conv.5} parent=11 // pred_check_branch
        %123 = sbr.rel (%p121) target = $region20
      $region19: #{double_conv.5} parent=11 // pred_region
        _
      $region20: #{double_conv.5} parent=11 // pred_fallthru
        _
    $region12: #{double_conv.5} parent=5 // pred_fallthru
      _
    %p124 = scmp.lt.s32.totalorder %s9, 4
    // Predicated region
    $region21: #{double_conv.5} parent=5 // pred_check
      %p125 = pneg %p124
    $region22: #{double_conv.5} parent=5 // pred_check_branch
      %127 = sbr.rel (%p125) target = $region24
    $region23: #{double_conv.5} parent=5 // pred_region
      // Predicated region
      $region25: #{double_conv.5} parent=23 // pred_check
        %p128 = pneg %p29
      $region26: #{double_conv.5} parent=23 // pred_check_branch
        %130 = sbr.rel (%p128) target = $region28
      $region27: #{double_conv.5} parent=23 // pred_region
        %p131 = scmp.lt.s32.totalorder %s9, 3
        %s132 = scalar_select %p131, %s9, 3
        %s133 = smul.addr %s132, 8
        %s134 = scalar_lea.vmem %s0, %s133
      $region28: #{double_conv.5} parent=23 // pred_fallthru
        _
    $region24: #{double_conv.5} parent=5 // pred_fallthru
      _
    %p135 = scmp.le.s32.totalorder 1, %s9
    %p136 = scmp.lt.s32.totalorder %s9, 5
    %p137 = pnand %p135, %p136
    %p138 = pneg %p137
    // Predicated region
    $region29: #{double_conv.5} parent=5 // pred_check
      _
    $region30: #{double_conv.5} parent=5 // pred_check_branch
      %140 = sbr.rel (%p137) target = $region32
    $region31: #{double_conv.5} parent=5 // pred_region
      %s141 = ssub.s32 %s9, 1
      %p142 = scmp.lt.s32.totalorder %s14, 3
      %s143 = scalar_select %p142, %s14, 3
      %s144 = smul.addr %s143, 8
      %s145 = scalar_lea.vmem %s0, %s144
      %p146 = pneg %p35
      %p147 = pneg %p32
      %p148 = pneg %p56
      %p149 = pneg %p53
      %p150 = pneg %p77
      %p151 = pneg %p74
      %p152 = pneg %p103
      %p153 = pneg %p100
      %p154 = scmp.lt.s32.totalorder %s14, 3
      %s155 = scalar_select %p154, %s14, 3
      %s156 = smul.addr %s155, 8
      %s157 = scalar_lea.vmem %s3, %s156
      %p158 = scmp.lt.s32.totalorder %s14, 3
      %s159 = scalar_select %p158, %s14, 3
      %s160 = smul.addr %s159, 8
      %s161 = scalar_lea.vmem %s0, %s160
      %p162 = scmp.lt.s32.totalorder %s14, 3
      %s163 = scalar_select %p162, %s14, 3
      %s164 = smul.addr %s163, 8
      %s165 = scalar_lea.vmem %s3, %s164
      %v166 = vld [vmem:[%s161] sm:$0xff]
      %v167 = vld [vmem:[%s1] sm:$0x1]
      %v169 = vlaneseq
      %v170 = vshrl.u32 %v169, 7
      %v171 = vsub.s32 0, %v170
      %v172 = vrot.slane %v167, %v171
      %v174 = vmul.f32 %v166, %v172
      %v175 = vld [vmem:[%s2] sm:$0x1]
      %v177 = vlaneseq
      %v178 = vshrl.u32 %v177, 7
      %v179 = vsub.s32 0, %v178
      %v180 = vrot.slane %v175, %v179
      %v182 = vadd.f32 %v174, %v180
      %v183 = vmax.f32 %v182, 0.0
      %184 = vst [vmem:[%s165] sm:$0xff] %v183
      %p185 = scmp.lt.s32.totalorder %s14, 3
      %s186 = scalar_select %p185, %s14, 3
      %s187 = smul.addr %s186, 8
      %s188 = scalar_lea.vmem %s3, %s187
      // Predicated region
      $region33: #{double_conv.5} parent=31 // pred_check
        %p189 = pneg %p100
      $region34: #{double_conv.5} parent=31 // pred_check_branch
        %191 = sbr.rel (%p189) target = $region36
      $region35: #{double_conv.5} parent=31 // pred_region
        _
      $region36: #{double_conv.5} parent=31 // pred_fallthru
        _
    $region32: #{double_conv.5} parent=5 // pred_fallthru
      _
    %p192 = scmp.le.s32.totalorder 2, %s9
    // Predicated region
    $region37: #{double_conv.5} parent=5 // pred_check
      %p193 = pneg %p192
    $region38: #{double_conv.5} parent=5 // pred_check_branch
      %195 = sbr.rel (%p193) target = $region40
    $region39: #{double_conv.5} parent=5 // pred_region
      %s196 = ssub.s32 %s9, 2
      // Predicated region
      $region41: #{double_conv.5} parent=39 // pred_check
        %p197 = pneg %p106
      $region42: #{double_conv.5} parent=39 // pred_check_branch
        %199 = sbr.rel (%p197) target = $region44
      $region43: #{double_conv.5} parent=39 // pred_region
        %p200 = scmp.lt.s32.totalorder %s15, 3
        %s201 = scalar_select %p200, %s15, 3
        %s202 = smul.addr %s201, 8
        %s203 = scalar_lea.vmem %s3, %s202
      $region44: #{double_conv.5} parent=39 // pred_fallthru
        _
    $region40: #{double_conv.5} parent=5 // pred_fallthru
      _
  $region6: #{double_conv.5} parent=0 // loop_footer
    %s13 = sadd.s32 1, %s9
  $region7: #{double_conv.5} parent=0 // loop_footer_branch
    %8 = sbr.rel target = $region3
  $region8: #{double_conv.5} parent=0 // loop_exit
    _

</llo_original>
